<compile_context>
chip_gen: v6e
topology: v6e:2x2x1
jax: 0.10.0
libtpu: 0.0.40
codegen_flags: <defaults>
</compile_context>

<pallas_src>
import jax
import jax.numpy as jnp
from jax.experimental import pallas as pl
from jax.experimental.pallas import tpu as pltpu  # noqa: F401  (kept for CompilerParams if scaled up)


# --------------------------------------------------------------------------
# Fused embedding-gather + GRU + attention kernel. Single invocation (no grid):
# every operand is a whole-array VMEM block. Rows are ordered (s, b) with the
# batch padded to Bp=8 so all per-step slices/stores are tile-aligned.
# --------------------------------------------------------------------------
def encoder_kernel(idx_ref, emb_ref,
                   w_all_ref, b_all_ref, u_all_ref, bnh_ref,
                   w1_ref, b1_ref, w2_ref, b2_ref,
                   wa_ref, ba_ref,
                   ev_ref, y_ref, att_ref, ma_ref):
    SB, E = ev_ref.shape         # S*Bp rows, ordered (s, b)
    Bp, H = att_ref.shape
    S = SB // Bp
    Vp = emb_ref.shape[0]

    # ---- embedding gather fused in-kernel as a one-hot matmul (tiny vocab) ----
    idx = idx_ref[...]                                                      # (SB, 1) int32
    iota = jax.lax.broadcasted_iota(jnp.int32, (SB, Vp), 1)
    onehot = (iota == idx).astype(jnp.float32)                              # (SB, Vp)
    x = jnp.dot(onehot, emb_ref[...], preferred_element_type=jnp.float32)   # (SB, E)
    ev_ref[...] = x                                                         # embed_vector output

    # ---- hoisted, gate-fused input projection: one matmul; lanes = [r | z | n] ----
    gi = jnp.dot(x, w_all_ref[...], preferred_element_type=jnp.float32) + b_all_ref[...]  # (SB, 3H)
    gi_r = gi[:, 0:H]
    gi_z = gi[:, H:2 * H]
    gi_n = gi[:, 2 * H:3 * H]

    u_all = u_all_ref[...]                                                  # (H, 3H)
    b_nh = bnh_ref[...]                                                     # (1, H)

    # ---- recurrence: statically unrolled; ONE MXU matmul per step ----
    # (If S grows beyond ~16, switch to lax.fori_loop(unroll=...) over a VMEM scratch.)
    h = jnp.zeros((Bp, H), jnp.float32)
    ys = []
    for s in range(S):
        lo = s * Bp                                                         # static, 8-aligned
        gh = jnp.dot(h, u_all, preferred_element_type=jnp.float32)          # (Bp, 3H)
        r = jax.nn.sigmoid(gi_r[lo:lo + Bp, :] + gh[:, 0:H])
        z = jax.nn.sigmoid(gi_z[lo:lo + Bp, :] + gh[:, H:2 * H])
        n = jnp.tanh(gi_n[lo:lo + Bp, :] + r * (gh[:, 2 * H:3 * H] + b_nh))
        h = (1.0 - z) * n + z * h
        ys.append(h)

    yf = jnp.concatenate(ys, axis=0)                                        # (SB, H) in-register
    y_ref[...] = yf                                                         # one dense slab store

    # ---- fused attention: yf stays in registers/VMEM ----
    h1 = jnp.tanh(jnp.dot(yf, w1_ref[...],
                          preferred_element_type=jnp.float32) + b1_ref[...])          # (SB, H)
    maf = jnp.dot(h1, w2_ref[...],
                  preferred_element_type=jnp.float32) + b2_ref[...]                   # (SB, K)
    ma_ref[...] = maf

    # ingre2att + bmm folded into one tile-aligned weighted sum over timesteps:
    #   att[b, :] = sum_s (sum_k wa[k] * ma[s,b,k]) * y[s,b,:] + ba
    w_flat = jnp.sum(maf * wa_ref[...], axis=-1, keepdims=True)             # (SB, 1)
    y3 = yf.reshape(S, Bp, H)
    w3 = w_flat.reshape(S, Bp, 1)
    att_ref[...] = jnp.sum(w3 * y3, axis=0) + ba_ref[...]


# --------------------------------------------------------------------------
# Full encoder_t forward (single Pallas kernel; only tiny index prep / output
# slicing happens in XLA).
# --------------------------------------------------------------------------
@jax.jit
def encoder_t_forward(y_idx, prep):
    B, S = y_idx.shape
    E = prep["emb"].shape[1]
    H = prep["u_all"].shape[0]
    K = prep["w2"].shape[1]
    Bp = -(-B // 8) * 8                     # pad batch to sublane multiple

    # Padded rows use word index 0 -> zero embedding row; all reductions are per-row,
    # so padded rows never contaminate real ones.
    y_pad = jnp.pad(y_idx, ((0, Bp - B), (0, 0)))
    idx_flat = jnp.transpose(y_pad, (1, 0)).reshape(S * Bp, 1)              # (s, b) row order

    ev_f, y_f, att_p, ma_f = pl.pallas_call(
        encoder_kernel,
        out_shape=(
            jax.ShapeDtypeStruct((S * Bp, E), jnp.float32),                 # embed_vector (flat)
            jax.ShapeDtypeStruct((S * Bp, H), jnp.float32),                 # y_embeds (flat)
            jax.ShapeDtypeStruct((Bp, H), jnp.float32),                     # att_y_embeds (padded)
            jax.ShapeDtypeStruct((S * Bp, K), jnp.float32),                 # multi_attention (flat)
        ),
    )(idx_flat, prep["emb"],
      prep["w_all"], prep["b_all"], prep["u_all"], prep["bn_h"],
      prep["w1"], prep["b1"], prep["w2"], prep["b2"],
      prep["wa"], prep["ba"])

    embed_vector = ev_f.reshape(S, Bp, E)[:, :B, :]                         # (S, B, E)
    y_embeds = y_f.reshape(S, Bp, H)[:, :B, :]                              # (S, B, H)
    att = att_p[:B, :]                                                      # (B, H)
    ma = jnp.transpose(ma_f.reshape(S, Bp, K)[:, :B, :], (1, 0, 2))         # (B, S, K)

    # TODO(synk): nn.Dropout is identity here (eval-mode semantics).
    return att, ma, y_embeds, embed_vector


# --------------------------------------------------------------------------
# One-time parameter preparation: split + fuse GRU gates, transpose to (in, out),
# fold r/z biases, pad the embedding table rows to a sublane multiple.
# Done once, outside the per-inference path.
# --------------------------------------------------------------------------
def prepare_params(params):
    f32 = jnp.float32
    w_ih = params["gru_w_ih"]            # (3H, E), PyTorch gate order r, z, n
    w_hh = params["gru_w_hh"]            # (3H, H)
    b_ih = params["gru_b_ih"]
    b_hh = params["gru_b_hh"]
    H = w_hh.shape[1]
    K = params["ws2_w"].shape[0]

    def gate(i):
        sl = slice(i * H, (i + 1) * H)
        return w_ih[sl], w_hh[sl], b_ih[sl], b_hh[sl]

    wir, whr, bir, bhr = gate(0)
    wiz, whz, biz, bhz = gate(1)
    win, whn, bin_, bhn = gate(2)

    # Gate-fused weights: output lanes [0:H]=r, [H:2H]=z, [2H:3H]=n.
    # (For larger H, pad each gate block to a 128-lane boundary so the post-matmul
    #  gate slices fall on vreg boundaries; unnecessary at 3H=96.)
    w_all = jnp.concatenate([wir.T, wiz.T, win.T], axis=1).astype(f32)      # (E, 3H)
    u_all = jnp.concatenate([whr.T, whz.T, whn.T], axis=1).astype(f32)      # (H, 3H)
    # r/z gates: b_ih + b_hh folded into the hoisted input projection; n gate: b_in only
    # (b_hn stays inside r * (h @ U_n + b_hn)).
    b_all = jnp.concatenate([bir + bhr, biz + bhz, bin_],
                            axis=0).reshape(1, 3 * H).astype(f32)

    emb = params["embedding"].astype(f32)
    V = emb.shape[0]
    Vp = -(-V // 8) * 8
    emb = jnp.pad(emb, ((0, Vp - V), (0, 0)))                               # pad rows never selected

    return {
        "emb": emb,                                                         # (Vp, E)
        "w_all": w_all, "b_all": b_all, "u_all": u_all,
        "bn_h": bhn.reshape(1, H).astype(f32),
        # attention
        "w1": jnp.asarray(params["ws1_w"].T, f32), "b1": params["ws1_b"].reshape(1, H).astype(f32),
        "w2": jnp.asarray(params["ws2_w"].T, f32), "b2": params["ws2_b"].reshape(1, K).astype(f32),
        "wa": params["i2a_w"].reshape(1, K).astype(f32),
        "ba": params["i2a_b"].reshape(1, 1).astype(f32),
    }


# --------------------------------------------------------------------------
# Pure-JAX reference for correctness check (uses the raw PyTorch-layout params).
# --------------------------------------------------------------------------
def reference_forward(y_idx, params):
    embed = jnp.take(params["embedding"], y_idx, axis=0)
    embed_vector = jnp.transpose(embed, (1, 0, 2))                          # (S, B, E)

    w_ih, w_hh = params["gru_w_ih"], params["gru_w_hh"]
    b_ih, b_hh = params["gru_b_ih"], params["gru_b_hh"]
    B = y_idx.shape[0]
    H = w_hh.shape[1]

    def step(h, x):
        gi = x @ w_ih.T + b_ih
        gh = h @ w_hh.T + b_hh
        i_r, i_z, i_n = jnp.split(gi, 3, axis=-1)
        h_r, h_z, h_n = jnp.split(gh, 3, axis=-1)
        r = jax.nn.sigmoid(i_r + h_r)
        z = jax.nn.sigmoid(i_z + h_z)
        n = jnp.tanh(i_n + r * h_n)
        h_new = (1.0 - z) * n + z * h
        return h_new, h_new

    _, y_embeds = jax.lax.scan(step, jnp.zeros((B, H), jnp.float32), embed_vector)

    yb = jnp.transpose(y_embeds, (1, 0, 2))                                 # (B, S, H)
    ma = jnp.tanh(yb @ params["ws1_w"].T + params["ws1_b"]) @ params["ws2_w"].T + params["ws2_b"]
    ctx = jnp.einsum("bsk,bsh->bkh", ma, yb)                                # (B, K, H)
    att = jnp.einsum("bkh,k->bh", ctx, params["i2a_w"][0]) + params["i2a_b"][0]
    return att, ma, y_embeds, embed_vector


# --------------------------------------------------------------------------
# Parameter construction (deterministic, synthetic weights, PyTorch layouts).
# --------------------------------------------------------------------------
def make_params(key, vocab, emb_dim, num_hidden, num_key_ingre):
    ks = jax.random.split(key, 12)
    wv = 0.1 * jax.random.normal(ks[0], (vocab, emb_dim), jnp.float32)
    embedding = jnp.concatenate([jnp.zeros((1, emb_dim), jnp.float32), wv], axis=0)

    def n(k, shape, scale):
        return scale * jax.random.normal(k, shape, jnp.float32)

    return {
        "embedding": embedding,                                   # (vocab+1, E)
        "gru_w_ih": n(ks[1], (3 * num_hidden, emb_dim), 0.1),     # (3H, E)
        "gru_w_hh": n(ks[2], (3 * num_hidden, num_hidden), 0.1),  # (3H, H)
        "gru_b_ih": n(ks[3], (3 * num_hidden,), 0.1),
        "gru_b_hh": n(ks[4], (3 * num_hidden,), 0.1),
        "ws1_w": n(ks[5], (num_hidden, num_hidden), 0.01),        # N(0, 0.01) init
        "ws1_b": n(ks[6], (num_hidden,), 0.01),
        "ws2_w": n(ks[7], (num_key_ingre, num_hidden), 0.01),
        "ws2_b": n(ks[8], (num_key_ingre,), 0.01),
        "i2a_w": n(ks[9], (1, num_key_ingre), 0.01),
        "i2a_b": n(ks[10], (1,), 0.01),
    }


if __name__ == "__main__":
    B, S = 2, 8               # batch, sequence (max_seq small for the demo)
    E, H, K = 32, 32, 5       # embedding dim, num_hidden, num_key_ingre
    VOCAB = 20

    key = jax.random.PRNGKey(0)
    k_par, k_idx = jax.random.split(key)
    params = make_params(k_par, VOCAB, E, H, K)
    prep = prepare_params(params)     # one-time weight split / fuse / transpose (off the inference path)

    # Word indices in [0, VOCAB]; 0 is padding.
    y_idx = jax.random.randint(k_idx, (B, S), 0, VOCAB + 1, dtype=jnp.int32)

    att, ma, y_embeds, embed_vector = encoder_t_forward(y_idx, prep)
    jax.block_until_ready((att, ma, y_embeds, embed_vector))

    att_r, ma_r, ye_r, ev_r = reference_forward(y_idx, params)
    assert att.shape == (B, H)
    assert ma.shape == (B, S, K)
    assert y_embeds.shape == (S, B, H)
    assert embed_vector.shape == (S, B, E)
    assert jnp.allclose(embed_vector, ev_r, atol=2e-3, rtol=2e-3)
    assert jnp.allclose(y_embeds, ye_r, atol=2e-3, rtol=2e-3)
    assert jnp.allclose(ma, ma_r, atol=2e-3, rtol=2e-3)
    assert jnp.allclose(att, att_r, atol=2e-3, rtol=2e-3)

    print("KERNEL_OK")
</pallas_src>

<mosaic_0001>
module attributes {stable_mosaic.version = 11 : i64} {
  func.func @encoder_kernel(%arg0: memref<64x1xi32, #tpu.memory_space<vmem>>, %arg1: memref<24x32xf32, #tpu.memory_space<vmem>>, %arg2: memref<32x96xf32, #tpu.memory_space<vmem>>, %arg3: memref<1x96xf32, #tpu.memory_space<vmem>>, %arg4: memref<32x96xf32, #tpu.memory_space<vmem>>, %arg5: memref<1x32xf32, #tpu.memory_space<vmem>>, %arg6: memref<32x32xf32, #tpu.memory_space<vmem>>, %arg7: memref<1x32xf32, #tpu.memory_space<vmem>>, %arg8: memref<32x5xf32, #tpu.memory_space<vmem>>, %arg9: memref<1x5xf32, #tpu.memory_space<vmem>>, %arg10: memref<1x5xf32, #tpu.memory_space<vmem>>, %arg11: memref<1x1xf32, #tpu.memory_space<vmem>>, %arg12: memref<64x32xf32, #tpu.memory_space<vmem>>, %arg13: memref<64x32xf32, #tpu.memory_space<vmem>>, %arg14: memref<8x32xf32, #tpu.memory_space<vmem>>, %arg15: memref<64x5xf32, #tpu.memory_space<vmem>>) attributes {dimension_semantics = [], scalar_prefetch = 0 : i64, scratch_operands = 0 : i64, tpu.core_type = #tpu.core_type<tc>} {
    %c0 = arith.constant 0 : index
    %c0_0 = arith.constant 0 : index
    %0 = vector.load %arg0[%c0, %c0_0] : memref<64x1xi32, #tpu.memory_space<vmem>>, vector<64x1xi32>
    %1 = tpu.iota {dimensions = array<i32: 1>} : vector<64x24xi32>
    %2 = vector.broadcast %0 : vector<64x1xi32> to vector<64x24xi32>
    %3 = arith.cmpi eq, %1, %2 : vector<64x24xi32>
    %4 = arith.extui %3 : vector<64x24xi1> to vector<64x24xi32>
    %5 = arith.sitofp %4 : vector<64x24xi32> to vector<64x24xf32>
    %c0_1 = arith.constant 0 : index
    %c0_2 = arith.constant 0 : index
    %6 = vector.load %arg1[%c0_1, %c0_2] : memref<24x32xf32, #tpu.memory_space<vmem>>, vector<24x32xf32>
    %cst = arith.constant dense<0.000000e+00> : vector<64x32xf32>
    %7 = tpu.matmul %5, %6, %cst {dimension_numbers = #tpu.dot_dimension_numbers<[1], [0], [0], [1], [0, 0, 1, 1], [], []>} : vector<64x24xf32>, vector<24x32xf32>, vector<64x32xf32> -> vector<64x32xf32>
    %c0_3 = arith.constant 0 : index
    %c0_4 = arith.constant 0 : index
    %8 = vector.load %arg12[%c0_3, %c0_4] : memref<64x32xf32, #tpu.memory_space<vmem>>, vector<64x32xf32>
    tpu.vector_store %arg12[%c0_3, %c0_4], %7 {strides = array<i32>} : memref<64x32xf32, #tpu.memory_space<vmem>>, vector<64x32xf32>,
    %c0_5 = arith.constant 0 : index
    %c0_6 = arith.constant 0 : index
    %9 = vector.load %arg2[%c0_5, %c0_6] : memref<32x96xf32, #tpu.memory_space<vmem>>, vector<32x96xf32>
    %cst_7 = arith.constant dense<0.000000e+00> : vector<64x96xf32>
    %10 = tpu.matmul %7, %9, %cst_7 {dimension_numbers = #tpu.dot_dimension_numbers<[1], [0], [0], [1], [0, 0, 1, 1], [], []>} : vector<64x32xf32>, vector<32x96xf32>, vector<64x96xf32> -> vector<64x96xf32>
    %c0_8 = arith.constant 0 : index
    %c0_9 = arith.constant 0 : index
    %11 = vector.load %arg3[%c0_8, %c0_9] : memref<1x96xf32, #tpu.memory_space<vmem>>, vector<1x96xf32>
    %12 = vector.broadcast %11 : vector<1x96xf32> to vector<64x96xf32>
    %13 = arith.addf %10, %12 : vector<64x96xf32>
    %14 = vector.extract_strided_slice %13 {offsets = [0, 0], sizes = [64, 32], strides = [1, 1]} : vector<64x96xf32> to vector<64x32xf32>
    %15 = vector.extract_strided_slice %13 {offsets = [0, 32], sizes = [64, 32], strides = [1, 1]} : vector<64x96xf32> to vector<64x32xf32>
    %16 = vector.extract_strided_slice %13 {offsets = [0, 64], sizes = [64, 32], strides = [1, 1]} : vector<64x96xf32> to vector<64x32xf32>
    %c0_10 = arith.constant 0 : index
    %c0_11 = arith.constant 0 : index
    %17 = vector.load %arg4[%c0_10, %c0_11] : memref<32x96xf32, #tpu.memory_space<vmem>>, vector<32x96xf32>
    %c0_12 = arith.constant 0 : index
    %c0_13 = arith.constant 0 : index
    %18 = vector.load %arg5[%c0_12, %c0_13] : memref<1x32xf32, #tpu.memory_space<vmem>>, vector<1x32xf32>
    %cst_14 = arith.constant 0.000000e+00 : f32
    %19 = vector.broadcast %cst_14 : f32 to vector<8x32xf32>
    %cst_15 = arith.constant dense<0.000000e+00> : vector<8x96xf32>
    %20 = tpu.matmul %19, %17, %cst_15 {dimension_numbers = #tpu.dot_dimension_numbers<[1], [0], [0], [1], [0, 0, 1, 1], [], []>} : vector<8x32xf32>, vector<32x96xf32>, vector<8x96xf32> -> vector<8x96xf32>
    %21 = vector.extract_strided_slice %14 {offsets = [0, 0], sizes = [8, 32], strides = [1, 1]} : vector<64x32xf32> to vector<8x32xf32>
    %22 = vector.extract_strided_slice %20 {offsets = [0, 0], sizes = [8, 32], strides = [1, 1]} : vector<8x96xf32> to vector<8x32xf32>
    %23 = arith.addf %21, %22 : vector<8x32xf32>
    %24 = arith.negf %23 : vector<8x32xf32>
    %25 = math.exp %24 : vector<8x32xf32>
    %cst_16 = arith.constant 1.000000e+00 : f32
    %26 = vector.broadcast %cst_16 : f32 to vector<8x32xf32>
    %27 = arith.addf %26, %25 : vector<8x32xf32>
    %28 = arith.divf %26, %27 : vector<8x32xf32>
    %29 = vector.extract_strided_slice %15 {offsets = [0, 0], sizes = [8, 32], strides = [1, 1]} : vector<64x32xf32> to vector<8x32xf32>
    %30 = vector.extract_strided_slice %20 {offsets = [0, 32], sizes = [8, 32], strides = [1, 1]} : vector<8x96xf32> to vector<8x32xf32>
    %31 = arith.addf %29, %30 : vector<8x32xf32>
    %32 = arith.negf %31 : vector<8x32xf32>
    %33 = math.exp %32 : vector<8x32xf32>
    %cst_17 = arith.constant 1.000000e+00 : f32
    %34 = vector.broadcast %cst_17 : f32 to vector<8x32xf32>
    %35 = arith.addf %34, %33 : vector<8x32xf32>
    %36 = arith.divf %34, %35 : vector<8x32xf32>
    %37 = vector.extract_strided_slice %16 {offsets = [0, 0], sizes = [8, 32], strides = [1, 1]} : vector<64x32xf32> to vector<8x32xf32>
    %38 = vector.extract_strided_slice %20 {offsets = [0, 64], sizes = [8, 32], strides = [1, 1]} : vector<8x96xf32> to vector<8x32xf32>
    %39 = vector.broadcast %18 : vector<1x32xf32> to vector<8x32xf32>
    %40 = arith.addf %38, %39 : vector<8x32xf32>
    %41 = arith.mulf %28, %40 : vector<8x32xf32>
    %42 = arith.addf %37, %41 : vector<8x32xf32>
    %43 = math.tanh %42 : vector<8x32xf32>
    %cst_18 = arith.constant 1.000000e+00 : f32
    %44 = vector.broadcast %cst_18 : f32 to vector<8x32xf32>
    %45 = arith.subf %44, %36 : vector<8x32xf32>
    %46 = arith.mulf %45, %43 : vector<8x32xf32>
    %47 = arith.mulf %36, %19 : vector<8x32xf32>
    %48 = arith.addf %46, %47 : vector<8x32xf32>
    %cst_19 = arith.constant dense<0.000000e+00> : vector<8x96xf32>
    %49 = tpu.matmul %48, %17, %cst_19 {dimension_numbers = #tpu.dot_dimension_numbers<[1], [0], [0], [1], [0, 0, 1, 1], [], []>} : vector<8x32xf32>, vector<32x96xf32>, vector<8x96xf32> -> vector<8x96xf32>
    %50 = vector.extract_strided_slice %14 {offsets = [8, 0], sizes = [8, 32], strides = [1, 1]} : vector<64x32xf32> to vector<8x32xf32>
    %51 = vector.extract_strided_slice %49 {offsets = [0, 0], sizes = [8, 32], strides = [1, 1]} : vector<8x96xf32> to vector<8x32xf32>
    %52 = arith.addf %50, %51 : vector<8x32xf32>
    %53 = arith.negf %52 : vector<8x32xf32>
    %54 = math.exp %53 : vector<8x32xf32>
    %cst_20 = arith.constant 1.000000e+00 : f32
    %55 = vector.broadcast %cst_20 : f32 to vector<8x32xf32>
    %56 = arith.addf %55, %54 : vector<8x32xf32>
    %57 = arith.divf %55, %56 : vector<8x32xf32>
    %58 = vector.extract_strided_slice %15 {offsets = [8, 0], sizes = [8, 32], strides = [1, 1]} : vector<64x32xf32> to vector<8x32xf32>
    %59 = vector.extract_strided_slice %49 {offsets = [0, 32], sizes = [8, 32], strides = [1, 1]} : vector<8x96xf32> to vector<8x32xf32>
    %60 = arith.addf %58, %59 : vector<8x32xf32>
    %61 = arith.negf %60 : vector<8x32xf32>
    %62 = math.exp %61 : vector<8x32xf32>
    %cst_21 = arith.constant 1.000000e+00 : f32
    %63 = vector.broadcast %cst_21 : f32 to vector<8x32xf32>
    %64 = arith.addf %63, %62 : vector<8x32xf32>
    %65 = arith.divf %63, %64 : vector<8x32xf32>
    %66 = vector.extract_strided_slice %16 {offsets = [8, 0], sizes = [8, 32], strides = [1, 1]} : vector<64x32xf32> to vector<8x32xf32>
    %67 = vector.extract_strided_slice %49 {offsets = [0, 64], sizes = [8, 32], strides = [1, 1]} : vector<8x96xf32> to vector<8x32xf32>
    %68 = vector.broadcast %18 : vector<1x32xf32> to vector<8x32xf32>
    %69 = arith.addf %67, %68 : vector<8x32xf32>
    %70 = arith.mulf %57, %69 : vector<8x32xf32>
    %71 = arith.addf %66, %70 : vector<8x32xf32>
    %72 = math.tanh %71 : vector<8x32xf32>
    %cst_22 = arith.constant 1.000000e+00 : f32
    %73 = vector.broadcast %cst_22 : f32 to vector<8x32xf32>
    %74 = arith.subf %73, %65 : vector<8x32xf32>
    %75 = arith.mulf %74, %72 : vector<8x32xf32>
    %76 = arith.mulf %65, %48 : vector<8x32xf32>
    %77 = arith.addf %75, %76 : vector<8x32xf32>
    %cst_23 = arith.constant dense<0.000000e+00> : vector<8x96xf32>
    %78 = tpu.matmul %77, %17, %cst_23 {dimension_numbers = #tpu.dot_dimension_numbers<[1], [0], [0], [1], [0, 0, 1, 1], [], []>} : vector<8x32xf32>, vector<32x96xf32>, vector<8x96xf32> -> vector<8x96xf32>
    %79 = vector.extract_strided_slice %14 {offsets = [16, 0], sizes = [8, 32], strides = [1, 1]} : vector<64x32xf32> to vector<8x32xf32>
    %80 = vector.extract_strided_slice %78 {offsets = [0, 0], sizes = [8, 32], strides = [1, 1]} : vector<8x96xf32> to vector<8x32xf32>
    %81 = arith.addf %79, %80 : vector<8x32xf32>
    %82 = arith.negf %81 : vector<8x32xf32>
    %83 = math.exp %82 : vector<8x32xf32>
    %cst_24 = arith.constant 1.000000e+00 : f32
    %84 = vector.broadcast %cst_24 : f32 to vector<8x32xf32>
    %85 = arith.addf %84, %83 : vector<8x32xf32>
    %86 = arith.divf %84, %85 : vector<8x32xf32>
    %87 = vector.extract_strided_slice %15 {offsets = [16, 0], sizes = [8, 32], strides = [1, 1]} : vector<64x32xf32> to vector<8x32xf32>
    %88 = vector.extract_strided_slice %78 {offsets = [0, 32], sizes = [8, 32], strides = [1, 1]} : vector<8x96xf32> to vector<8x32xf32>
    %89 = arith.addf %87, %88 : vector<8x32xf32>
    %90 = arith.negf %89 : vector<8x32xf32>
    %91 = math.exp %90 : vector<8x32xf32>
    %cst_25 = arith.constant 1.000000e+00 : f32
    %92 = vector.broadcast %cst_25 : f32 to vector<8x32xf32>
    %93 = arith.addf %92, %91 : vector<8x32xf32>
    %94 = arith.divf %92, %93 : vector<8x32xf32>
    %95 = vector.extract_strided_slice %16 {offsets = [16, 0], sizes = [8, 32], strides = [1, 1]} : vector<64x32xf32> to vector<8x32xf32>
    %96 = vector.extract_strided_slice %78 {offsets = [0, 64], sizes = [8, 32], strides = [1, 1]} : vector<8x96xf32> to vector<8x32xf32>
    %97 = vector.broadcast %18 : vector<1x32xf32> to vector<8x32xf32>
    %98 = arith.addf %96, %97 : vector<8x32xf32>
    %99 = arith.mulf %86, %98 : vector<8x32xf32>
    %100 = arith.addf %95, %99 : vector<8x32xf32>
    %101 = math.tanh %100 : vector<8x32xf32>
    %cst_26 = arith.constant 1.000000e+00 : f32
    %102 = vector.broadcast %cst_26 : f32 to vector<8x32xf32>
    %103 = arith.subf %102, %94 : vector<8x32xf32>
    %104 = arith.mulf %103, %101 : vector<8x32xf32>
    %105 = arith.mulf %94, %77 : vector<8x32xf32>
    %106 = arith.addf %104, %105 : vector<8x32xf32>
    %cst_27 = arith.constant dense<0.000000e+00> : vector<8x96xf32>
    %107 = tpu.matmul %106, %17, %cst_27 {dimension_numbers = #tpu.dot_dimension_numbers<[1], [0], [0], [1], [0, 0, 1, 1], [], []>} : vector<8x32xf32>, vector<32x96xf32>, vector<8x96xf32> -> vector<8x96xf32>
    %108 = vector.extract_strided_slice %14 {offsets = [24, 0], sizes = [8, 32], strides = [1, 1]} : vector<64x32xf32> to vector<8x32xf32>
    %109 = vector.extract_strided_slice %107 {offsets = [0, 0], sizes = [8, 32], strides = [1, 1]} : vector<8x96xf32> to vector<8x32xf32>
    %110 = arith.addf %108, %109 : vector<8x32xf32>
    %111 = arith.negf %110 : vector<8x32xf32>
    %112 = math.exp %111 : vector<8x32xf32>
    %cst_28 = arith.constant 1.000000e+00 : f32
    %113 = vector.broadcast %cst_28 : f32 to vector<8x32xf32>
    %114 = arith.addf %113, %112 : vector<8x32xf32>
    %115 = arith.divf %113, %114 : vector<8x32xf32>
    %116 = vector.extract_strided_slice %15 {offsets = [24, 0], sizes = [8, 32], strides = [1, 1]} : vector<64x32xf32> to vector<8x32xf32>
    %117 = vector.extract_strided_slice %107 {offsets = [0, 32], sizes = [8, 32], strides = [1, 1]} : vector<8x96xf32> to vector<8x32xf32>
    %118 = arith.addf %116, %117 : vector<8x32xf32>
    %119 = arith.negf %118 : vector<8x32xf32>
    %120 = math.exp %119 : vector<8x32xf32>
    %cst_29 = arith.constant 1.000000e+00 : f32
    %121 = vector.broadcast %cst_29 : f32 to vector<8x32xf32>
    %122 = arith.addf %121, %120 : vector<8x32xf32>
    %123 = arith.divf %121, %122 : vector<8x32xf32>
    %124 = vector.extract_strided_slice %16 {offsets = [24, 0], sizes = [8, 32], strides = [1, 1]} : vector<64x32xf32> to vector<8x32xf32>
    %125 = vector.extract_strided_slice %107 {offsets = [0, 64], sizes = [8, 32], strides = [1, 1]} : vector<8x96xf32> to vector<8x32xf32>
    %126 = vector.broadcast %18 : vector<1x32xf32> to vector<8x32xf32>
    %127 = arith.addf %125, %126 : vector<8x32xf32>
    %128 = arith.mulf %115, %127 : vector<8x32xf32>
    %129 = arith.addf %124, %128 : vector<8x32xf32>
    %130 = math.tanh %129 : vector<8x32xf32>
    %cst_30 = arith.constant 1.000000e+00 : f32
    %131 = vector.broadcast %cst_30 : f32 to vector<8x32xf32>
    %132 = arith.subf %131, %123 : vector<8x32xf32>
    %133 = arith.mulf %132, %130 : vector<8x32xf32>
    %134 = arith.mulf %123, %106 : vector<8x32xf32>
    %135 = arith.addf %133, %134 : vector<8x32xf32>
    %cst_31 = arith.constant dense<0.000000e+00> : vector<8x96xf32>
    %136 = tpu.matmul %135, %17, %cst_31 {dimension_numbers = #tpu.dot_dimension_numbers<[1], [0], [0], [1], [0, 0, 1, 1], [], []>} : vector<8x32xf32>, vector<32x96xf32>, vector<8x96xf32> -> vector<8x96xf32>
    %137 = vector.extract_strided_slice %14 {offsets = [32, 0], sizes = [8, 32], strides = [1, 1]} : vector<64x32xf32> to vector<8x32xf32>
    %138 = vector.extract_strided_slice %136 {offsets = [0, 0], sizes = [8, 32], strides = [1, 1]} : vector<8x96xf32> to vector<8x32xf32>
    %139 = arith.addf %137, %138 : vector<8x32xf32>
    %140 = arith.negf %139 : vector<8x32xf32>
    %141 = math.exp %140 : vector<8x32xf32>
    %cst_32 = arith.constant 1.000000e+00 : f32
    %142 = vector.broadcast %cst_32 : f32 to vector<8x32xf32>
    %143 = arith.addf %142, %141 : vector<8x32xf32>
    %144 = arith.divf %142, %143 : vector<8x32xf32>
    %145 = vector.extract_strided_slice %15 {offsets = [32, 0], sizes = [8, 32], strides = [1, 1]} : vector<64x32xf32> to vector<8x32xf32>
    %146 = vector.extract_strided_slice %136 {offsets = [0, 32], sizes = [8, 32], strides = [1, 1]} : vector<8x96xf32> to vector<8x32xf32>
    %147 = arith.addf %145, %146 : vector<8x32xf32>
    %148 = arith.negf %147 : vector<8x32xf32>
    %149 = math.exp %148 : vector<8x32xf32>
    %cst_33 = arith.constant 1.000000e+00 : f32
    %150 = vector.broadcast %cst_33 : f32 to vector<8x32xf32>
    %151 = arith.addf %150, %149 : vector<8x32xf32>
    %152 = arith.divf %150, %151 : vector<8x32xf32>
    %153 = vector.extract_strided_slice %16 {offsets = [32, 0], sizes = [8, 32], strides = [1, 1]} : vector<64x32xf32> to vector<8x32xf32>
    %154 = vector.extract_strided_slice %136 {offsets = [0, 64], sizes = [8, 32], strides = [1, 1]} : vector<8x96xf32> to vector<8x32xf32>
    %155 = vector.broadcast %18 : vector<1x32xf32> to vector<8x32xf32>
    %156 = arith.addf %154, %155 : vector<8x32xf32>
    %157 = arith.mulf %144, %156 : vector<8x32xf32>
    %158 = arith.addf %153, %157 : vector<8x32xf32>
    %159 = math.tanh %158 : vector<8x32xf32>
    %cst_34 = arith.constant 1.000000e+00 : f32
    %160 = vector.broadcast %cst_34 : f32 to vector<8x32xf32>
    %161 = arith.subf %160, %152 : vector<8x32xf32>
    %162 = arith.mulf %161, %159 : vector<8x32xf32>
    %163 = arith.mulf %152, %135 : vector<8x32xf32>
    %164 = arith.addf %162, %163 : vector<8x32xf32>
    %cst_35 = arith.constant dense<0.000000e+00> : vector<8x96xf32>
    %165 = tpu.matmul %164, %17, %cst_35 {dimension_numbers = #tpu.dot_dimension_numbers<[1], [0], [0], [1], [0, 0, 1, 1], [], []>} : vector<8x32xf32>, vector<32x96xf32>, vector<8x96xf32> -> vector<8x96xf32>
    %166 = vector.extract_strided_slice %14 {offsets = [40, 0], sizes = [8, 32], strides = [1, 1]} : vector<64x32xf32> to vector<8x32xf32>
    %167 = vector.extract_strided_slice %165 {offsets = [0, 0], sizes = [8, 32], strides = [1, 1]} : vector<8x96xf32> to vector<8x32xf32>
    %168 = arith.addf %166, %167 : vector<8x32xf32>
    %169 = arith.negf %168 : vector<8x32xf32>
    %170 = math.exp %169 : vector<8x32xf32>
    %cst_36 = arith.constant 1.000000e+00 : f32
    %171 = vector.broadcast %cst_36 : f32 to vector<8x32xf32>
    %172 = arith.addf %171, %170 : vector<8x32xf32>
    %173 = arith.divf %171, %172 : vector<8x32xf32>
    %174 = vector.extract_strided_slice %15 {offsets = [40, 0], sizes = [8, 32], strides = [1, 1]} : vector<64x32xf32> to vector<8x32xf32>
    %175 = vector.extract_strided_slice %165 {offsets = [0, 32], sizes = [8, 32], strides = [1, 1]} : vector<8x96xf32> to vector<8x32xf32>
    %176 = arith.addf %174, %175 : vector<8x32xf32>
    %177 = arith.negf %176 : vector<8x32xf32>
    %178 = math.exp %177 : vector<8x32xf32>
    %cst_37 = arith.constant 1.000000e+00 : f32
    %179 = vector.broadcast %cst_37 : f32 to vector<8x32xf32>
    %180 = arith.addf %179, %178 : vector<8x32xf32>
    %181 = arith.divf %179, %180 : vector<8x32xf32>
    %182 = vector.extract_strided_slice %16 {offsets = [40, 0], sizes = [8, 32], strides = [1, 1]} : vector<64x32xf32> to vector<8x32xf32>
    %183 = vector.extract_strided_slice %165 {offsets = [0, 64], sizes = [8, 32], strides = [1, 1]} : vector<8x96xf32> to vector<8x32xf32>
    %184 = vector.broadcast %18 : vector<1x32xf32> to vector<8x32xf32>
    %185 = arith.addf %183, %184 : vector<8x32xf32>
    %186 = arith.mulf %173, %185 : vector<8x32xf32>
    %187 = arith.addf %182, %186 : vector<8x32xf32>
    %188 = math.tanh %187 : vector<8x32xf32>
    %cst_38 = arith.constant 1.000000e+00 : f32
    %189 = vector.broadcast %cst_38 : f32 to vector<8x32xf32>
    %190 = arith.subf %189, %181 : vector<8x32xf32>
    %191 = arith.mulf %190, %188 : vector<8x32xf32>
    %192 = arith.mulf %181, %164 : vector<8x32xf32>
    %193 = arith.addf %191, %192 : vector<8x32xf32>
    %cst_39 = arith.constant dense<0.000000e+00> : vector<8x96xf32>
    %194 = tpu.matmul %193, %17, %cst_39 {dimension_numbers = #tpu.dot_dimension_numbers<[1], [0], [0], [1], [0, 0, 1, 1], [], []>} : vector<8x32xf32>, vector<32x96xf32>, vector<8x96xf32> -> vector<8x96xf32>
    %195 = vector.extract_strided_slice %14 {offsets = [48, 0], sizes = [8, 32], strides = [1, 1]} : vector<64x32xf32> to vector<8x32xf32>
    %196 = vector.extract_strided_slice %194 {offsets = [0, 0], sizes = [8, 32], strides = [1, 1]} : vector<8x96xf32> to vector<8x32xf32>
    %197 = arith.addf %195, %196 : vector<8x32xf32>
    %198 = arith.negf %197 : vector<8x32xf32>
    %199 = math.exp %198 : vector<8x32xf32>
    %cst_40 = arith.constant 1.000000e+00 : f32
    %200 = vector.broadcast %cst_40 : f32 to vector<8x32xf32>
    %201 = arith.addf %200, %199 : vector<8x32xf32>
    %202 = arith.divf %200, %201 : vector<8x32xf32>
    %203 = vector.extract_strided_slice %15 {offsets = [48, 0], sizes = [8, 32], strides = [1, 1]} : vector<64x32xf32> to vector<8x32xf32>
    %204 = vector.extract_strided_slice %194 {offsets = [0, 32], sizes = [8, 32], strides = [1, 1]} : vector<8x96xf32> to vector<8x32xf32>
    %205 = arith.addf %203, %204 : vector<8x32xf32>
    %206 = arith.negf %205 : vector<8x32xf32>
    %207 = math.exp %206 : vector<8x32xf32>
    %cst_41 = arith.constant 1.000000e+00 : f32
    %208 = vector.broadcast %cst_41 : f32 to vector<8x32xf32>
    %209 = arith.addf %208, %207 : vector<8x32xf32>
    %210 = arith.divf %208, %209 : vector<8x32xf32>
    %211 = vector.extract_strided_slice %16 {offsets = [48, 0], sizes = [8, 32], strides = [1, 1]} : vector<64x32xf32> to vector<8x32xf32>
    %212 = vector.extract_strided_slice %194 {offsets = [0, 64], sizes = [8, 32], strides = [1, 1]} : vector<8x96xf32> to vector<8x32xf32>
    %213 = vector.broadcast %18 : vector<1x32xf32> to vector<8x32xf32>
    %214 = arith.addf %212, %213 : vector<8x32xf32>
    %215 = arith.mulf %202, %214 : vector<8x32xf32>
    %216 = arith.addf %211, %215 : vector<8x32xf32>
    %217 = math.tanh %216 : vector<8x32xf32>
    %cst_42 = arith.constant 1.000000e+00 : f32
    %218 = vector.broadcast %cst_42 : f32 to vector<8x32xf32>
    %219 = arith.subf %218, %210 : vector<8x32xf32>
    %220 = arith.mulf %219, %217 : vector<8x32xf32>
    %221 = arith.mulf %210, %193 : vector<8x32xf32>
    %222 = arith.addf %220, %221 : vector<8x32xf32>
    %cst_43 = arith.constant dense<0.000000e+00> : vector<8x96xf32>
    %223 = tpu.matmul %222, %17, %cst_43 {dimension_numbers = #tpu.dot_dimension_numbers<[1], [0], [0], [1], [0, 0, 1, 1], [], []>} : vector<8x32xf32>, vector<32x96xf32>, vector<8x96xf32> -> vector<8x96xf32>
    %224 = vector.extract_strided_slice %14 {offsets = [56, 0], sizes = [8, 32], strides = [1, 1]} : vector<64x32xf32> to vector<8x32xf32>
    %225 = vector.extract_strided_slice %223 {offsets = [0, 0], sizes = [8, 32], strides = [1, 1]} : vector<8x96xf32> to vector<8x32xf32>
    %226 = arith.addf %224, %225 : vector<8x32xf32>
    %227 = arith.negf %226 : vector<8x32xf32>
    %228 = math.exp %227 : vector<8x32xf32>
    %cst_44 = arith.constant 1.000000e+00 : f32
    %229 = vector.broadcast %cst_44 : f32 to vector<8x32xf32>
    %230 = arith.addf %229, %228 : vector<8x32xf32>
    %231 = arith.divf %229, %230 : vector<8x32xf32>
    %232 = vector.extract_strided_slice %15 {offsets = [56, 0], sizes = [8, 32], strides = [1, 1]} : vector<64x32xf32> to vector<8x32xf32>
    %233 = vector.extract_strided_slice %223 {offsets = [0, 32], sizes = [8, 32], strides = [1, 1]} : vector<8x96xf32> to vector<8x32xf32>
    %234 = arith.addf %232, %233 : vector<8x32xf32>
    %235 = arith.negf %234 : vector<8x32xf32>
    %236 = math.exp %235 : vector<8x32xf32>
    %cst_45 = arith.constant 1.000000e+00 : f32
    %237 = vector.broadcast %cst_45 : f32 to vector<8x32xf32>
    %238 = arith.addf %237, %236 : vector<8x32xf32>
    %239 = arith.divf %237, %238 : vector<8x32xf32>
    %240 = vector.extract_strided_slice %16 {offsets = [56, 0], sizes = [8, 32], strides = [1, 1]} : vector<64x32xf32> to vector<8x32xf32>
    %241 = vector.extract_strided_slice %223 {offsets = [0, 64], sizes = [8, 32], strides = [1, 1]} : vector<8x96xf32> to vector<8x32xf32>
    %242 = vector.broadcast %18 : vector<1x32xf32> to vector<8x32xf32>
    %243 = arith.addf %241, %242 : vector<8x32xf32>
    %244 = arith.mulf %231, %243 : vector<8x32xf32>
    %245 = arith.addf %240, %244 : vector<8x32xf32>
    %246 = math.tanh %245 : vector<8x32xf32>
    %cst_46 = arith.constant 1.000000e+00 : f32
    %247 = vector.broadcast %cst_46 : f32 to vector<8x32xf32>
    %248 = arith.subf %247, %239 : vector<8x32xf32>
    %249 = arith.mulf %248, %246 : vector<8x32xf32>
    %250 = arith.mulf %239, %222 : vector<8x32xf32>
    %251 = arith.addf %249, %250 : vector<8x32xf32>
    %252 = tpu.concatenate %48, %77, %106, %135, %164, %193, %222, %251 in 0 : vector<8x32xf32>, vector<8x32xf32>, vector<8x32xf32>, vector<8x32xf32>, vector<8x32xf32>, vector<8x32xf32>, vector<8x32xf32>, vector<8x32xf32> -> vector<64x32xf32>
    %c0_47 = arith.constant 0 : index
    %c0_48 = arith.constant 0 : index
    %253 = vector.load %arg13[%c0_47, %c0_48] : memref<64x32xf32, #tpu.memory_space<vmem>>, vector<64x32xf32>
    tpu.vector_store %arg13[%c0_47, %c0_48], %252 {strides = array<i32>} : memref<64x32xf32, #tpu.memory_space<vmem>>, vector<64x32xf32>,
    %c0_49 = arith.constant 0 : index
    %c0_50 = arith.constant 0 : index
    %254 = vector.load %arg6[%c0_49, %c0_50] : memref<32x32xf32, #tpu.memory_space<vmem>>, vector<32x32xf32>
    %cst_51 = arith.constant dense<0.000000e+00> : vector<64x32xf32>
    %255 = tpu.matmul %252, %254, %cst_51 {dimension_numbers = #tpu.dot_dimension_numbers<[1], [0], [0], [1], [0, 0, 1, 1], [], []>} : vector<64x32xf32>, vector<32x32xf32>, vector<64x32xf32> -> vector<64x32xf32>
    %c0_52 = arith.constant 0 : index
    %c0_53 = arith.constant 0 : index
    %256 = vector.load %arg7[%c0_52, %c0_53] : memref<1x32xf32, #tpu.memory_space<vmem>>, vector<1x32xf32>
    %257 = vector.broadcast %256 : vector<1x32xf32> to vector<64x32xf32>
    %258 = arith.addf %255, %257 : vector<64x32xf32>
    %259 = math.tanh %258 : vector<64x32xf32>
    %c0_54 = arith.constant 0 : index
    %c0_55 = arith.constant 0 : index
    %260 = vector.load %arg8[%c0_54, %c0_55] : memref<32x5xf32, #tpu.memory_space<vmem>>, vector<32x5xf32>
    %cst_56 = arith.constant dense<0.000000e+00> : vector<64x5xf32>
    %261 = tpu.matmul %259, %260, %cst_56 {dimension_numbers = #tpu.dot_dimension_numbers<[1], [0], [0], [1], [0, 0, 1, 1], [], []>} : vector<64x32xf32>, vector<32x5xf32>, vector<64x5xf32> -> vector<64x5xf32>
    %c0_57 = arith.constant 0 : index
    %c0_58 = arith.constant 0 : index
    %262 = vector.load %arg9[%c0_57, %c0_58] : memref<1x5xf32, #tpu.memory_space<vmem>>, vector<1x5xf32>
    %263 = vector.broadcast %262 : vector<1x5xf32> to vector<64x5xf32>
    %264 = arith.addf %261, %263 : vector<64x5xf32>
    %c0_59 = arith.constant 0 : index
    %c0_60 = arith.constant 0 : index
    %265 = vector.load %arg15[%c0_59, %c0_60] : memref<64x5xf32, #tpu.memory_space<vmem>>, vector<64x5xf32>
    tpu.vector_store %arg15[%c0_59, %c0_60], %264 {strides = array<i32>} : memref<64x5xf32, #tpu.memory_space<vmem>>, vector<64x5xf32>,
    %c0_61 = arith.constant 0 : index
    %c0_62 = arith.constant 0 : index
    %266 = vector.load %arg10[%c0_61, %c0_62] : memref<1x5xf32, #tpu.memory_space<vmem>>, vector<1x5xf32>
    %267 = vector.broadcast %266 : vector<1x5xf32> to vector<64x5xf32>
    %268 = arith.mulf %264, %267 : vector<64x5xf32>
    %cst_63 = arith.constant dense<0.000000e+00> : vector<64xf32>
    %269 = vector.multi_reduction <add>, %268, %cst_63 [1] : vector<64x5xf32> to vector<64xf32>
    %270 = vector.shape_cast %269 : vector<64xf32> to vector<64x1xf32>
    %271 = vector.shape_cast %252 : vector<64x32xf32> to vector<8x8x32xf32>
    %272 = vector.shape_cast %270 : vector<64x1xf32> to vector<8x8x1xf32>
    %273 = vector.broadcast %272 : vector<8x8x1xf32> to vector<8x8x32xf32>
    %274 = arith.mulf %273, %271 : vector<8x8x32xf32>
    %cst_64 = arith.constant dense<0.000000e+00> : vector<8x32xf32>
    %275 = vector.multi_reduction <add>, %274, %cst_64 [0] : vector<8x8x32xf32> to vector<8x32xf32>
    %c0_65 = arith.constant 0 : index
    %c0_66 = arith.constant 0 : index
    %276 = vector.load %arg11[%c0_65, %c0_66] : memref<1x1xf32, #tpu.memory_space<vmem>>, vector<1x1xf32>
    %277 = vector.broadcast %276 : vector<1x1xf32> to vector<8x32xf32>
    %278 = arith.addf %275, %277 : vector<8x32xf32>
    %c0_67 = arith.constant 0 : index
    %c0_68 = arith.constant 0 : index
    %279 = vector.load %arg14[%c0_67, %c0_68] : memref<8x32xf32, #tpu.memory_space<vmem>>, vector<8x32xf32>
    tpu.vector_store %arg14[%c0_67, %c0_68], %278 {strides = array<i32>} : memref<8x32xf32, #tpu.memory_space<vmem>>, vector<8x32xf32>,
    return
  }
}

</mosaic_0001>

<llo_original>
// kernel: encoder_t_forward.1
$region0: #{encoder_t_forward.1}
  #allocation0 [shape = 'u32[]', space=smem, size = 0x4, offset = 0x4, fixed_abs, tag = 'smem constant byte address 0x4 - core index']
  #allocation1 [shape = 'u32[144,128]{1,0:T(1,128)}', space=vmem, size = 0x12000, scoped, tag = 'internal scratch']
  #allocation2 [shape = 'f32[1,1]{1,0:T(1,128)S(1)}', space=vmem, size = 0x200, scoped, tag = 'scoped memory for encoder_t_forward.1']
  %s0 = inlined_call_operand.vmem [shape: s32[64,1], index: 0, kind: input, shape index: {}]
  %s1 = inlined_call_operand.vmem [shape: f32[24,32], index: 1, kind: input, shape index: {}]
  %s2 = inlined_call_operand.vmem [shape: f32[32,96], index: 2, kind: input, shape index: {}]
  %s3 = inlined_call_operand.vmem [shape: f32[1,96], index: 3, kind: input, shape index: {}]
  %s4 = inlined_call_operand.vmem [shape: f32[32,96], index: 4, kind: input, shape index: {}]
  %s5 = inlined_call_operand.vmem [shape: f32[1,32], index: 5, kind: input, shape index: {}]
  %s6 = inlined_call_operand.vmem [shape: f32[32,32], index: 6, kind: input, shape index: {}]
  %s7 = inlined_call_operand.vmem [shape: f32[1,32], index: 7, kind: input, shape index: {}]
  %s8 = inlined_call_operand.vmem [shape: f32[32,5], index: 8, kind: input, shape index: {}]
  %s9 = inlined_call_operand.vmem [shape: f32[1,5], index: 9, kind: input, shape index: {}]
  %s10 = inlined_call_operand.vmem [shape: f32[1,5], index: 10, kind: input, shape index: {}]
  %s11 = inlined_call_operand.<no memory space> [shape: f32[1,1], index: 11, kind: input, shape index: {}]
  %s12 = inlined_call_operand.vmem [shape: f32[64,32], index: 12, kind: output, shape index: {0}]
  %s13 = inlined_call_operand.vmem [shape: f32[64,32], index: 13, kind: output, shape index: {1}]
  %s14 = inlined_call_operand.vmem [shape: f32[8,32], index: 14, kind: output, shape index: {2}]
  %s15 = inlined_call_operand.vmem [shape: f32[64,5], index: 15, kind: output, shape index: {3}]
  %16 = xla_tuple %s12, %s13, %s14, %s15
  %s17 = sld [smem:[#allocation0]]
  $region82: #{encoder_t_forward.1} parent=0
    _
  %s19 = ssub.s32 1, %s17
  %s20 = scalar_select 0, %s19, %s17
  %v21 = vstv %s11
  %22 = vst [vmem:[#allocation2] sm:$0x1] %v21
  // Predicated region
  $region2: #{encoder_t_forward.1} parent=0 // pred_check
    _
  $region3: #{encoder_t_forward.1} parent=0 // pred_check_branch
    %24 = sbr.rel (0) target = $region5
  $region4: #{encoder_t_forward.1} parent=0 // pred_region
    _
  $region5: #{encoder_t_forward.1} parent=0 // pred_fallthru
    _
  // Predicated region
  $region6: #{encoder_t_forward.1} parent=0 // pred_check
    _
  $region7: #{encoder_t_forward.1} parent=0 // pred_check_branch
    %26 = sbr.rel (0) target = $region9
  $region8: #{encoder_t_forward.1} parent=0 // pred_region
    _
  $region9: #{encoder_t_forward.1} parent=0 // pred_fallthru
    _
  // Predicated region
  $region10: #{encoder_t_forward.1} parent=0 // pred_check
    _
  $region11: #{encoder_t_forward.1} parent=0 // pred_check_branch
    %28 = sbr.rel (0) target = $region13
  $region12: #{encoder_t_forward.1} parent=0 // pred_region
    _
  $region13: #{encoder_t_forward.1} parent=0 // pred_fallthru
    _
  // Predicated region
  $region14: #{encoder_t_forward.1} parent=0 // pred_check
    _
  $region15: #{encoder_t_forward.1} parent=0 // pred_check_branch
    %30 = sbr.rel (0) target = $region17
  $region16: #{encoder_t_forward.1} parent=0 // pred_region
    _
  $region17: #{encoder_t_forward.1} parent=0 // pred_fallthru
    _
  // Predicated region
  $region18: #{encoder_t_forward.1} parent=0 // pred_check
    _
  $region19: #{encoder_t_forward.1} parent=0 // pred_check_branch
    %32 = sbr.rel (0) target = $region21
  $region20: #{encoder_t_forward.1} parent=0 // pred_region
    _
  $region21: #{encoder_t_forward.1} parent=0 // pred_fallthru
    _
  // Predicated region
  $region22: #{encoder_t_forward.1} parent=0 // pred_check
    _
  $region23: #{encoder_t_forward.1} parent=0 // pred_check_branch
    %34 = sbr.rel (0) target = $region25
  $region24: #{encoder_t_forward.1} parent=0 // pred_region
    _
  $region25: #{encoder_t_forward.1} parent=0 // pred_fallthru
    _
  // Predicated region
  $region26: #{encoder_t_forward.1} parent=0 // pred_check
    _
  $region27: #{encoder_t_forward.1} parent=0 // pred_check_branch
    %36 = sbr.rel (0) target = $region29
  $region28: #{encoder_t_forward.1} parent=0 // pred_region
    _
  $region29: #{encoder_t_forward.1} parent=0 // pred_fallthru
    _
  // Predicated region
  $region30: #{encoder_t_forward.1} parent=0 // pred_check
    _
  $region31: #{encoder_t_forward.1} parent=0 // pred_check_branch
    %38 = sbr.rel (0) target = $region33
  $region32: #{encoder_t_forward.1} parent=0 // pred_region
    _
  $region33: #{encoder_t_forward.1} parent=0 // pred_fallthru
    _
  // Predicated region
  $region34: #{encoder_t_forward.1} parent=0 // pred_check
    _
  $region35: #{encoder_t_forward.1} parent=0 // pred_check_branch
    %40 = sbr.rel (0) target = $region37
  $region36: #{encoder_t_forward.1} parent=0 // pred_region
    _
  $region37: #{encoder_t_forward.1} parent=0 // pred_fallthru
    _
  // Predicated region
  $region38: #{encoder_t_forward.1} parent=0 // pred_check
    _
  $region39: #{encoder_t_forward.1} parent=0 // pred_check_branch
    %42 = sbr.rel (0) target = $region41
  $region40: #{encoder_t_forward.1} parent=0 // pred_region
    _
  $region41: #{encoder_t_forward.1} parent=0 // pred_fallthru
    _
  // Predicated region
  $region42: #{encoder_t_forward.1} parent=0 // pred_check
    _
  $region43: #{encoder_t_forward.1} parent=0 // pred_check_branch
    %44 = sbr.rel (0) target = $region45
  $region44: #{encoder_t_forward.1} parent=0 // pred_region
    _
  $region45: #{encoder_t_forward.1} parent=0 // pred_fallthru
    _
  // Predicated region
  $region46: #{encoder_t_forward.1} parent=0 // pred_check
    _
  $region47: #{encoder_t_forward.1} parent=0 // pred_check_branch
    %46 = sbr.rel (0) target = $region49
  $region48: #{encoder_t_forward.1} parent=0 // pred_region
    _
  $region49: #{encoder_t_forward.1} parent=0 // pred_fallthru
    _
  %v47 = vld [vmem:[%s0] sm:$0xff]
  %v48 = vld [vmem:[%s0 + $0x8] sm:$0xff]
  %v49 = vld [vmem:[%s0 + $0x10] sm:$0xff]
  %v50 = vld [vmem:[%s0 + $0x18] sm:$0xff]
  %v51 = vld [vmem:[%s0 + $0x20] sm:$0xff]
  %v52 = vld [vmem:[%s0 + $0x28] sm:$0xff]
  %v53 = vld [vmem:[%s0 + $0x30] sm:$0xff]
  %v54 = vld [vmem:[%s0 + $0x38] sm:$0xff]
  %v55 = vlaneseq
  %v56 = vand.u32 %v55, 127
  %57 = vset.pattern.permute.xlu0 0
  %58 = vperm.xlu0 %57, %v47
  %v59 = vpop.permute.xlu0 %58
  %60 = vset.pattern.permute.xlu0 0
  %61 = vperm.xlu0 %60, %v48
  %v62 = vpop.permute.xlu0 %61
  %63 = vset.pattern.permute.xlu0 0
  %64 = vperm.xlu0 %63, %v49
  %v65 = vpop.permute.xlu0 %64
  %66 = vset.pattern.permute.xlu0 0
  %67 = vperm.xlu0 %66, %v50
  %v68 = vpop.permute.xlu0 %67
  %69 = vset.pattern.permute.xlu0 0
  %70 = vperm.xlu0 %69, %v51
  %v71 = vpop.permute.xlu0 %70
  %72 = vset.pattern.permute.xlu0 0
  %73 = vperm.xlu0 %72, %v52
  %v74 = vpop.permute.xlu0 %73
  %75 = vset.pattern.permute.xlu0 0
  %76 = vperm.xlu0 %75, %v53
  %v77 = vpop.permute.xlu0 %76
  %78 = vset.pattern.permute.xlu0 0
  %79 = vperm.xlu0 %78, %v54
  %v80 = vpop.permute.xlu0 %79
  %vm81 = vcmp.eq.s32.totalorder %v56, %v59
  %vm82 = vcmp.eq.s32.totalorder %v56, %v62
  %vm83 = vcmp.eq.s32.totalorder %v56, %v65
  %vm84 = vcmp.eq.s32.totalorder %v56, %v68
  %vm85 = vcmp.eq.s32.totalorder %v56, %v71
  %vm86 = vcmp.eq.s32.totalorder %v56, %v74
  %vm87 = vcmp.eq.s32.totalorder %v56, %v77
  %vm88 = vcmp.eq.s32.totalorder %v56, %v80
  %v89 = vsel %vm81, 1, 0
  %v90 = vsel %vm82, 1, 0
  %v91 = vsel %vm83, 1, 0
  %v92 = vsel %vm84, 1, 0
  %v93 = vsel %vm85, 1, 0
  %v94 = vsel %vm86, 1, 0
  %v95 = vsel %vm87, 1, 0
  %v96 = vsel %vm88, 1, 0
  %v97 = vcvt.s32.f32 %v89
  %v98 = vcvt.s32.f32 %v90
  %v99 = vcvt.s32.f32 %v91
  %v100 = vcvt.s32.f32 %v92
  %v101 = vcvt.s32.f32 %v93
  %v102 = vcvt.s32.f32 %v94
  %v103 = vcvt.s32.f32 %v95
  %v104 = vcvt.s32.f32 %v96
  %v105 = vld [vmem:[%s1] sm:$0xff]
  %v106 = vld [vmem:[%s1 + $0x8] sm:$0xff]
  %v107 = vld [vmem:[%s1 + $0x10] sm:$0xff]
  %vm108 = vcmask 195584
  %v110 = vsel %vm108, %v97, 0
  %v113 = vsel %vm108, %v98, 0
  %v116 = vsel %vm108, %v99, 0
  %v119 = vsel %vm108, %v100, 0
  %v122 = vsel %vm108, %v101, 0
  %v125 = vsel %vm108, %v102, 0
  %v128 = vsel %vm108, %v103, 0
  %v131 = vsel %vm108, %v104, 0
  %133 = vmatprep.subr.mxu0 0.0
  %134 = vmatpush1.msra.mxu0 0.0
  %135 = vmatprep.subr.mxu0 0.0
  %136 = vmatpush1.msra.mxu0 0.0
  %137 = vmatprep.subr.mxu0 0.0
  %138 = vmatpush1.msra.mxu0 0.0
  %139 = vmatprep.subr.mxu0 0.0
  %140 = vmatpush1.msra.mxu0 0.0
  %141 = vmatprep.subr.mxu0 0.0
  %142 = vmatpush1.msra.mxu0 0.0
  %143 = vmatprep.subr.mxu0 0.0
  %144 = vmatpush1.msra.mxu0 0.0
  %145 = vmatprep.subr.mxu0 0.0
  %146 = vmatpush1.msra.mxu0 0.0
  %147 = vmatprep.subr.mxu0 0.0
  %148 = vmatpush1.msra.mxu0 0.0
  %149 = vmatprep.subr.mxu0 0.0
  %150 = vmatpush1.msra.mxu0 0.0
  %151 = vmatprep.subr.mxu0 0.0
  %152 = vmatpush1.msra.mxu0 0.0
  %153 = vmatprep.subr.mxu0 0.0
  %154 = vmatpush1.msra.mxu0 0.0
  %155 = vmatprep.subr.mxu0 0.0
  %156 = vmatpush1.msra.mxu0 0.0
  %157 = vmatprep.subr.mxu0 0.0
  %158 = vmatpush1.msra.mxu0 0.0
  %159 = vmatprep.subr.mxu0 0.0
  %160 = vmatpush1.msra.mxu0 %v107
  %161 = vmatprep.subr.mxu0 0.0
  %162 = vmatpush1.msra.mxu0 %v106
  %163 = vmatprep.subr.mxu0 0.0
  %164 = vmatpush1.msra.mxu0 %v105
  %165 = vmatprep.subr.mxu0 0.0
  %166 = vmatpush2.msra.mxu0 0.0
  %167 = vmatprep.subr.mxu0 0.0
  %168 = vmatpush2.msra.mxu0 0.0
  %169 = vmatprep.subr.mxu0 0.0
  %170 = vmatpush2.msra.mxu0 0.0
  %171 = vmatprep.subr.mxu0 0.0
  %172 = vmatpush2.msra.mxu0 0.0
  %173 = vmatprep.subr.mxu0 0.0
  %174 = vmatpush2.msra.mxu0 0.0
  %175 = vmatprep.subr.mxu0 0.0
  %176 = vmatpush2.msra.mxu0 0.0
  %177 = vmatprep.subr.mxu0 0.0
  %178 = vmatpush2.msra.mxu0 0.0
  %179 = vmatprep.subr.mxu0 0.0
  %180 = vmatpush2.msra.mxu0 0.0
  %181 = vmatprep.subr.mxu0 0.0
  %182 = vmatpush2.msra.mxu0 0.0
  %183 = vmatprep.subr.mxu0 0.0
  %184 = vmatpush2.msra.mxu0 0.0
  %185 = vmatprep.subr.mxu0 0.0
  %186 = vmatpush2.msra.mxu0 0.0
  %187 = vmatprep.subr.mxu0 0.0
  %188 = vmatpush2.msra.mxu0 0.0
  %189 = vmatprep.subr.mxu0 0.0
  %190 = vmatpush2.msra.mxu0 0.0
  %191 = vmatprep.subr.mxu0 0.0
  %192 = vmatpush2.msra.mxu0 0.0
  %193 = vmatprep.subr.mxu0 0.0
  %194 = vmatpush2.msra.mxu0 0.0
  %195 = vmatprep.subr.mxu0 0.0
  %196 = vmatpush2.msra.mxu0 0.0
  %197 = vmatprep.mubr.f32.mxu0 0.0
  %198 = vmatmul.mubr.f32.gmra.mxu0 %v110
  %v199 = vpop.f32.mrf.mxu0
  %v200 = vadd.f32 0.0, %v199
  %v201 = vpop.f32.mrf.mxu0
  %202 = vmatprep.mubr.f32.mxu0 0.0
  %203 = vmatmul.mubr.f32.gmra.mxu0 %v113
  %v204 = vpop.f32.mrf.mxu0
  %v205 = vadd.f32 0.0, %v204
  %v206 = vpop.f32.mrf.mxu0
  %207 = vmatprep.mubr.f32.mxu0 0.0
  %208 = vmatmul.mubr.f32.gmra.mxu0 %v116
  %v209 = vpop.f32.mrf.mxu0
  %v210 = vadd.f32 0.0, %v209
  %v211 = vpop.f32.mrf.mxu0
  %212 = vmatprep.mubr.f32.mxu0 0.0
  %213 = vmatmul.mubr.f32.gmra.mxu0 %v119
  %v214 = vpop.f32.mrf.mxu0
  %v215 = vadd.f32 0.0, %v214
  %v216 = vpop.f32.mrf.mxu0
  %217 = vmatprep.mubr.f32.mxu0 0.0
  %218 = vmatmul.mubr.f32.gmra.mxu0 %v122
  %v219 = vpop.f32.mrf.mxu0
  %v220 = vadd.f32 0.0, %v219
  %v221 = vpop.f32.mrf.mxu0
  %222 = vmatprep.mubr.f32.mxu0 0.0
  %223 = vmatmul.mubr.f32.gmra.mxu0 %v125
  %v224 = vpop.f32.mrf.mxu0
  %v225 = vadd.f32 0.0, %v224
  %v226 = vpop.f32.mrf.mxu0
  %227 = vmatprep.mubr.f32.mxu0 0.0
  %228 = vmatmul.mubr.f32.gmra.mxu0 %v128
  %v229 = vpop.f32.mrf.mxu0
  %v230 = vadd.f32 0.0, %v229
  %v231 = vpop.f32.mrf.mxu0
  %232 = vmatprep.mubr.f32.mxu0 0.0
  %233 = vmatmul.mubr.f32.gmra.mxu0 %v131
  %v234 = vpop.f32.mrf.mxu0
  %v235 = vadd.f32 0.0, %v234
  %v236 = vpop.f32.mrf.mxu0
  %237 = vdwg.mxu0
  %vm238 = vcmask 261120
  %239 = vst.msk [vmem:[%s12] sm:$0xff] %vm238, %v200
  %240 = vst.msk [vmem:[%s12 + $0x8] sm:$0xff] %vm238, %v205
  %241 = vst.msk [vmem:[%s12 + $0x10] sm:$0xff] %vm238, %v210
  %242 = vst.msk [vmem:[%s12 + $0x18] sm:$0xff] %vm238, %v215
  %243 = vst.msk [vmem:[%s12 + $0x20] sm:$0xff] %vm238, %v220
  %244 = vst.msk [vmem:[%s12 + $0x28] sm:$0xff] %vm238, %v225
  %245 = vst.msk [vmem:[%s12 + $0x30] sm:$0xff] %vm238, %v230
  %246 = vst.msk [vmem:[%s12 + $0x38] sm:$0xff] %vm238, %v235
  %v247 = vld [vmem:[%s2] sm:$0xff]
  %v248 = vld [vmem:[%s2 + $0x8] sm:$0xff]
  %v249 = vld [vmem:[%s2 + $0x10] sm:$0xff]
  %v250 = vld [vmem:[%s2 + $0x18] sm:$0xff]
  %v251 = vld [vmem:[%s3] sm:$0x1]
  %v253 = vlaneseq
  %v254 = vshrl.u32 %v253, 7
  %v255 = vsub.s32 0, %v254
  %v256 = vrot.slane %v251, %v255
  %v259 = vsel %vm238, %v200, 0
  %v262 = vsel %vm238, %v205, 0
  %v265 = vsel %vm238, %v210, 0
  %v268 = vsel %vm238, %v215, 0
  %v271 = vsel %vm238, %v220, 0
  %v274 = vsel %vm238, %v225, 0
  %v277 = vsel %vm238, %v230, 0
  %v280 = vsel %vm238, %v235, 0
  %282 = vmatprep.subr.mxu0 0.0
  %283 = vmatpush1.msra.mxu0 0.0
  %284 = vmatprep.subr.mxu0 0.0
  %285 = vmatpush1.msra.mxu0 0.0
  %286 = vmatprep.subr.mxu0 0.0
  %287 = vmatpush1.msra.mxu0 0.0
  %288 = vmatprep.subr.mxu0 0.0
  %289 = vmatpush1.msra.mxu0 0.0
  %290 = vmatprep.subr.mxu0 0.0
  %291 = vmatpush1.msra.mxu0 0.0
  %292 = vmatprep.subr.mxu0 0.0
  %293 = vmatpush1.msra.mxu0 0.0
  %294 = vmatprep.subr.mxu0 0.0
  %295 = vmatpush1.msra.mxu0 0.0
  %296 = vmatprep.subr.mxu0 0.0
  %297 = vmatpush1.msra.mxu0 0.0
  %298 = vmatprep.subr.mxu0 0.0
  %299 = vmatpush1.msra.mxu0 0.0
  %300 = vmatprep.subr.mxu0 0.0
  %301 = vmatpush1.msra.mxu0 0.0
  %302 = vmatprep.subr.mxu0 0.0
  %303 = vmatpush1.msra.mxu0 0.0
  %304 = vmatprep.subr.mxu0 0.0
  %305 = vmatpush1.msra.mxu0 0.0
  %306 = vmatprep.subr.mxu0 0.0
  %307 = vmatpush1.msra.mxu0 %v250
  %308 = vmatprep.subr.mxu0 0.0
  %309 = vmatpush1.msra.mxu0 %v249
  %310 = vmatprep.subr.mxu0 0.0
  %311 = vmatpush1.msra.mxu0 %v248
  %312 = vmatprep.subr.mxu0 0.0
  %313 = vmatpush1.msra.mxu0 %v247
  %314 = vmatprep.subr.mxu0 0.0
  %315 = vmatpush2.msra.mxu0 0.0
  %316 = vmatprep.subr.mxu0 0.0
  %317 = vmatpush2.msra.mxu0 0.0
  %318 = vmatprep.subr.mxu0 0.0
  %319 = vmatpush2.msra.mxu0 0.0
  %320 = vmatprep.subr.mxu0 0.0
  %321 = vmatpush2.msra.mxu0 0.0
  %322 = vmatprep.subr.mxu0 0.0
  %323 = vmatpush2.msra.mxu0 0.0
  %324 = vmatprep.subr.mxu0 0.0
  %325 = vmatpush2.msra.mxu0 0.0
  %326 = vmatprep.subr.mxu0 0.0
  %327 = vmatpush2.msra.mxu0 0.0
  %328 = vmatprep.subr.mxu0 0.0
  %329 = vmatpush2.msra.mxu0 0.0
  %330 = vmatprep.subr.mxu0 0.0
  %331 = vmatpush2.msra.mxu0 0.0
  %332 = vmatprep.subr.mxu0 0.0
  %333 = vmatpush2.msra.mxu0 0.0
  %334 = vmatprep.subr.mxu0 0.0
  %335 = vmatpush2.msra.mxu0 0.0
  %336 = vmatprep.subr.mxu0 0.0
  %337 = vmatpush2.msra.mxu0 0.0
  %338 = vmatprep.subr.mxu0 0.0
  %339 = vmatpush2.msra.mxu0 0.0
  %340 = vmatprep.subr.mxu0 0.0
  %341 = vmatpush2.msra.mxu0 0.0
  %342 = vmatprep.subr.mxu0 0.0
  %343 = vmatpush2.msra.mxu0 0.0
  %344 = vmatprep.subr.mxu0 0.0
  %345 = vmatpush2.msra.mxu0 0.0
  %346 = vmatprep.mubr.f32.mxu0 0.0
  %347 = vmatmul.mubr.f32.gmra.mxu0 %v259
  %v348 = vpop.f32.mrf.mxu0
  %v349 = vadd.f32 %v256, %v348
  %v350 = vpop.f32.mrf.mxu0
  %351 = vmatprep.mubr.f32.mxu0 0.0
  %352 = vmatmul.mubr.f32.gmra.mxu0 %v262
  %v353 = vpop.f32.mrf.mxu0
  %v354 = vadd.f32 %v256, %v353
  %v355 = vpop.f32.mrf.mxu0
  %356 = vmatprep.mubr.f32.mxu0 0.0
  %357 = vmatmul.mubr.f32.gmra.mxu0 %v265
  %v358 = vpop.f32.mrf.mxu0
  %v359 = vadd.f32 %v256, %v358
  %v360 = vpop.f32.mrf.mxu0
  %361 = vmatprep.mubr.f32.mxu0 0.0
  %362 = vmatmul.mubr.f32.gmra.mxu0 %v268
  %v363 = vpop.f32.mrf.mxu0
  %v364 = vadd.f32 %v256, %v363
  %v365 = vpop.f32.mrf.mxu0
  %366 = vmatprep.mubr.f32.mxu0 0.0
  %367 = vmatmul.mubr.f32.gmra.mxu0 %v271
  %v368 = vpop.f32.mrf.mxu0
  %v369 = vadd.f32 %v256, %v368
  %v370 = vpop.f32.mrf.mxu0
  %371 = vmatprep.mubr.f32.mxu0 0.0
  %372 = vmatmul.mubr.f32.gmra.mxu0 %v274
  %v373 = vpop.f32.mrf.mxu0
  %v374 = vadd.f32 %v256, %v373
  %v375 = vpop.f32.mrf.mxu0
  %376 = vmatprep.mubr.f32.mxu0 0.0
  %377 = vmatmul.mubr.f32.gmra.mxu0 %v277
  %v378 = vpop.f32.mrf.mxu0
  %v379 = vadd.f32 %v256, %v378
  %v380 = vpop.f32.mrf.mxu0
  %381 = vmatprep.mubr.f32.mxu0 0.0
  %382 = vmatmul.mubr.f32.gmra.mxu0 %v280
  %v383 = vpop.f32.mrf.mxu0
  %v384 = vadd.f32 %v256, %v383
  %v385 = vpop.f32.mrf.mxu0
  %386 = vdwg.mxu0
  %v387 = vld [vmem:[%s4] sm:$0xff]
  %v388 = vld [vmem:[%s4 + $0x8] sm:$0xff]
  %v389 = vld [vmem:[%s4 + $0x10] sm:$0xff]
  %v390 = vld [vmem:[%s4 + $0x18] sm:$0xff]
  %v391 = vld [vmem:[%s5] sm:$0x1]
  %v393 = vsel %vm238, 0.0, 0
  %395 = vmatprep.subr.mxu0 0.0
  %396 = vmatpush1.msra.mxu0 0.0
  %397 = vmatprep.subr.mxu0 0.0
  %398 = vmatpush1.msra.mxu0 0.0
  %399 = vmatprep.subr.mxu0 0.0
  %400 = vmatpush1.msra.mxu0 0.0
  %401 = vmatprep.subr.mxu0 0.0
  %402 = vmatpush1.msra.mxu0 0.0
  %403 = vmatprep.subr.mxu0 0.0
  %404 = vmatpush1.msra.mxu0 0.0
  %405 = vmatprep.subr.mxu0 0.0
  %406 = vmatpush1.msra.mxu0 0.0
  %407 = vmatprep.subr.mxu0 0.0
  %408 = vmatpush1.msra.mxu0 0.0
  %409 = vmatprep.subr.mxu0 0.0
  %410 = vmatpush1.msra.mxu0 0.0
  %411 = vmatprep.subr.mxu0 0.0
  %412 = vmatpush1.msra.mxu0 0.0
  %413 = vmatprep.subr.mxu0 0.0
  %414 = vmatpush1.msra.mxu0 0.0
  %415 = vmatprep.subr.mxu0 0.0
  %416 = vmatpush1.msra.mxu0 0.0
  %417 = vmatprep.subr.mxu0 0.0
  %418 = vmatpush1.msra.mxu0 0.0
  %419 = vmatprep.subr.mxu0 0.0
  %420 = vmatpush1.msra.mxu0 %v390
  %421 = vmatprep.subr.mxu0 0.0
  %422 = vmatpush1.msra.mxu0 %v389
  %423 = vmatprep.subr.mxu0 0.0
  %424 = vmatpush1.msra.mxu0 %v388
  %425 = vmatprep.subr.mxu0 0.0
  %426 = vmatpush1.msra.mxu0 %v387
  %427 = vmatprep.subr.mxu0 0.0
  %428 = vmatpush2.msra.mxu0 0.0
  %429 = vmatprep.subr.mxu0 0.0
  %430 = vmatpush2.msra.mxu0 0.0
  %431 = vmatprep.subr.mxu0 0.0
  %432 = vmatpush2.msra.mxu0 0.0
  %433 = vmatprep.subr.mxu0 0.0
  %434 = vmatpush2.msra.mxu0 0.0
  %435 = vmatprep.subr.mxu0 0.0
  %436 = vmatpush2.msra.mxu0 0.0
  %437 = vmatprep.subr.mxu0 0.0
  %438 = vmatpush2.msra.mxu0 0.0
  %439 = vmatprep.subr.mxu0 0.0
  %440 = vmatpush2.msra.mxu0 0.0
  %441 = vmatprep.subr.mxu0 0.0
  %442 = vmatpush2.msra.mxu0 0.0
  %443 = vmatprep.subr.mxu0 0.0
  %444 = vmatpush2.msra.mxu0 0.0
  %445 = vmatprep.subr.mxu0 0.0
  %446 = vmatpush2.msra.mxu0 0.0
  %447 = vmatprep.subr.mxu0 0.0
  %448 = vmatpush2.msra.mxu0 0.0
  %449 = vmatprep.subr.mxu0 0.0
  %450 = vmatpush2.msra.mxu0 0.0
  %451 = vmatprep.subr.mxu0 0.0
  %452 = vmatpush2.msra.mxu0 0.0
  %453 = vmatprep.subr.mxu0 0.0
  %454 = vmatpush2.msra.mxu0 0.0
  %455 = vmatprep.subr.mxu0 0.0
  %456 = vmatpush2.msra.mxu0 0.0
  %457 = vmatprep.subr.mxu0 0.0
  %458 = vmatpush2.msra.mxu0 0.0
  %459 = vmatprep.mubr.f32.mxu0 0.0
  %460 = vmatmul.mubr.f32.gmra.mxu0 %v393
  %v461 = vpop.f32.mrf.mxu0
  %v462 = vadd.f32 0.0, %v461
  %v463 = vpop.f32.mrf.mxu0
  %464 = vdwg.mxu0
  %v465 = vadd.f32 %v349, %v462
  %v466 = vxor.u32 %v465, 2147483648
  %v467 = vmul.f32 %v466, 1.442695
  %v468 = vpow.pop %v467
  %v469 = vadd.f32 %v468, 1.0
  %v470 = vrcp.pop %v469
  %v471 = vmul.f32 1.0, %v470
  %v473 = vlaneseq
  %v474 = vshrl.u32 %v473, 7
  %v475 = vsub.s32 0, %v474
  %v476 = vrot.slane %v391, %v475
  %477 = vrot.lane.b32.xlu0 %v476, 64
  %v478 = vpop.permute.xlu0 %477
  %v480 = vadd.f32 %v462, %v478
  %482 = vrot.lane.b32.xlu0 %v480, 64
  %v483 = vpop.permute.xlu0 %482
  %v485 = vmul.f32 %v471, %v483
  %487 = vrot.lane.b32.xlu0 %v485, 64
  %v488 = vpop.permute.xlu0 %487
  %v490 = vadd.f32 %v349, %v488
  %v491 = vtanh.pop %v490
  %v492 = vsub.f32 1.0, %v471
  %494 = vrot.lane.b32.xlu0 %v491, 96
  %v495 = vpop.permute.xlu0 %494
  %v497 = vmul.f32 %v492, %v495
  %v498 = vmul.f32 %v471, 0.0
  %v499 = vadd.f32 %v497, %v498
  %501 = vrot.lane.b32.xlu0 %v499, 96
  %v502 = vpop.permute.xlu0 %501
  %v503 = vsel %vm238, %v502, 0
  %505 = vmatprep.subr.mxu0 0.0
  %506 = vmatpush1.msra.mxu0 0.0
  %507 = vmatprep.subr.mxu0 0.0
  %508 = vmatpush1.msra.mxu0 0.0
  %509 = vmatprep.subr.mxu0 0.0
  %510 = vmatpush1.msra.mxu0 0.0
  %511 = vmatprep.subr.mxu0 0.0
  %512 = vmatpush1.msra.mxu0 0.0
  %513 = vmatprep.subr.mxu0 0.0
  %514 = vmatpush1.msra.mxu0 0.0
  %515 = vmatprep.subr.mxu0 0.0
  %516 = vmatpush1.msra.mxu0 0.0
  %517 = vmatprep.subr.mxu0 0.0
  %518 = vmatpush1.msra.mxu0 0.0
  %519 = vmatprep.subr.mxu0 0.0
  %520 = vmatpush1.msra.mxu0 0.0
  %521 = vmatprep.subr.mxu0 0.0
  %522 = vmatpush1.msra.mxu0 0.0
  %523 = vmatprep.subr.mxu0 0.0
  %524 = vmatpush1.msra.mxu0 0.0
  %525 = vmatprep.subr.mxu0 0.0
  %526 = vmatpush1.msra.mxu0 0.0
  %527 = vmatprep.subr.mxu0 0.0
  %528 = vmatpush1.msra.mxu0 0.0
  %529 = vmatprep.subr.mxu0 0.0
  %530 = vmatpush1.msra.mxu0 %v390
  %531 = vmatprep.subr.mxu0 0.0
  %532 = vmatpush1.msra.mxu0 %v389
  %533 = vmatprep.subr.mxu0 0.0
  %534 = vmatpush1.msra.mxu0 %v388
  %535 = vmatprep.subr.mxu0 0.0
  %536 = vmatpush1.msra.mxu0 %v387
  %537 = vmatprep.subr.mxu0 0.0
  %538 = vmatpush2.msra.mxu0 0.0
  %539 = vmatprep.subr.mxu0 0.0
  %540 = vmatpush2.msra.mxu0 0.0
  %541 = vmatprep.subr.mxu0 0.0
  %542 = vmatpush2.msra.mxu0 0.0
  %543 = vmatprep.subr.mxu0 0.0
  %544 = vmatpush2.msra.mxu0 0.0
  %545 = vmatprep.subr.mxu0 0.0
  %546 = vmatpush2.msra.mxu0 0.0
  %547 = vmatprep.subr.mxu0 0.0
  %548 = vmatpush2.msra.mxu0 0.0
  %549 = vmatprep.subr.mxu0 0.0
  %550 = vmatpush2.msra.mxu0 0.0
  %551 = vmatprep.subr.mxu0 0.0
  %552 = vmatpush2.msra.mxu0 0.0
  %553 = vmatprep.subr.mxu0 0.0
  %554 = vmatpush2.msra.mxu0 0.0
  %555 = vmatprep.subr.mxu0 0.0
  %556 = vmatpush2.msra.mxu0 0.0
  %557 = vmatprep.subr.mxu0 0.0
  %558 = vmatpush2.msra.mxu0 0.0
  %559 = vmatprep.subr.mxu0 0.0
  %560 = vmatpush2.msra.mxu0 0.0
  %561 = vmatprep.subr.mxu0 0.0
  %562 = vmatpush2.msra.mxu0 0.0
  %563 = vmatprep.subr.mxu0 0.0
  %564 = vmatpush2.msra.mxu0 0.0
  %565 = vmatprep.subr.mxu0 0.0
  %566 = vmatpush2.msra.mxu0 0.0
  %567 = vmatprep.subr.mxu0 0.0
  %568 = vmatpush2.msra.mxu0 0.0
  %569 = vmatprep.mubr.f32.mxu0 0.0
  %570 = vmatmul.mubr.f32.gmra.mxu0 %v503
  %v571 = vpop.f32.mrf.mxu0
  %v572 = vadd.f32 0.0, %v571
  %v573 = vpop.f32.mrf.mxu0
  %574 = vdwg.mxu0
  %v575 = vadd.f32 %v354, %v572
  %v576 = vxor.u32 %v575, 2147483648
  %v577 = vmul.f32 %v576, 1.442695
  %v578 = vpow.pop %v577
  %v579 = vadd.f32 %v578, 1.0
  %v580 = vrcp.pop %v579
  %v581 = vmul.f32 1.0, %v580
  %v582 = vadd.f32 %v572, %v478
  %584 = vrot.lane.b32.xlu0 %v582, 64
  %v585 = vpop.permute.xlu0 %584
  %v587 = vmul.f32 %v581, %v585
  %589 = vrot.lane.b32.xlu0 %v587, 64
  %v590 = vpop.permute.xlu0 %589
  %v592 = vadd.f32 %v354, %v590
  %v593 = vtanh.pop %v592
  %v594 = vsub.f32 1.0, %v581
  %596 = vrot.lane.b32.xlu0 %v593, 96
  %v597 = vpop.permute.xlu0 %596
  %v599 = vmul.f32 %v594, %v597
  %v600 = vmul.f32 %v581, %v499
  %v601 = vadd.f32 %v599, %v600
  %603 = vrot.lane.b32.xlu0 %v601, 96
  %v604 = vpop.permute.xlu0 %603
  %v605 = vsel %vm238, %v604, 0
  %607 = vmatprep.subr.mxu0 0.0
  %608 = vmatpush1.msra.mxu0 0.0
  %609 = vmatprep.subr.mxu0 0.0
  %610 = vmatpush1.msra.mxu0 0.0
  %611 = vmatprep.subr.mxu0 0.0
  %612 = vmatpush1.msra.mxu0 0.0
  %613 = vmatprep.subr.mxu0 0.0
  %614 = vmatpush1.msra.mxu0 0.0
  %615 = vmatprep.subr.mxu0 0.0
  %616 = vmatpush1.msra.mxu0 0.0
  %617 = vmatprep.subr.mxu0 0.0
  %618 = vmatpush1.msra.mxu0 0.0
  %619 = vmatprep.subr.mxu0 0.0
  %620 = vmatpush1.msra.mxu0 0.0
  %621 = vmatprep.subr.mxu0 0.0
  %622 = vmatpush1.msra.mxu0 0.0
  %623 = vmatprep.subr.mxu0 0.0
  %624 = vmatpush1.msra.mxu0 0.0
  %625 = vmatprep.subr.mxu0 0.0
  %626 = vmatpush1.msra.mxu0 0.0
  %627 = vmatprep.subr.mxu0 0.0
  %628 = vmatpush1.msra.mxu0 0.0
  %629 = vmatprep.subr.mxu0 0.0
  %630 = vmatpush1.msra.mxu0 0.0
  %631 = vmatprep.subr.mxu0 0.0
  %632 = vmatpush1.msra.mxu0 %v390
  %633 = vmatprep.subr.mxu0 0.0
  %634 = vmatpush1.msra.mxu0 %v389
  %635 = vmatprep.subr.mxu0 0.0
  %636 = vmatpush1.msra.mxu0 %v388
  %637 = vmatprep.subr.mxu0 0.0
  %638 = vmatpush1.msra.mxu0 %v387
  %639 = vmatprep.subr.mxu0 0.0
  %640 = vmatpush2.msra.mxu0 0.0
  %641 = vmatprep.subr.mxu0 0.0
  %642 = vmatpush2.msra.mxu0 0.0
  %643 = vmatprep.subr.mxu0 0.0
  %644 = vmatpush2.msra.mxu0 0.0
  %645 = vmatprep.subr.mxu0 0.0
  %646 = vmatpush2.msra.mxu0 0.0
  %647 = vmatprep.subr.mxu0 0.0
  %648 = vmatpush2.msra.mxu0 0.0
  %649 = vmatprep.subr.mxu0 0.0
  %650 = vmatpush2.msra.mxu0 0.0
  %651 = vmatprep.subr.mxu0 0.0
  %652 = vmatpush2.msra.mxu0 0.0
  %653 = vmatprep.subr.mxu0 0.0
  %654 = vmatpush2.msra.mxu0 0.0
  %655 = vmatprep.subr.mxu0 0.0
  %656 = vmatpush2.msra.mxu0 0.0
  %657 = vmatprep.subr.mxu0 0.0
  %658 = vmatpush2.msra.mxu0 0.0
  %659 = vmatprep.subr.mxu0 0.0
  %660 = vmatpush2.msra.mxu0 0.0
  %661 = vmatprep.subr.mxu0 0.0
  %662 = vmatpush2.msra.mxu0 0.0
  %663 = vmatprep.subr.mxu0 0.0
  %664 = vmatpush2.msra.mxu0 0.0
  %665 = vmatprep.subr.mxu0 0.0
  %666 = vmatpush2.msra.mxu0 0.0
  %667 = vmatprep.subr.mxu0 0.0
  %668 = vmatpush2.msra.mxu0 0.0
  %669 = vmatprep.subr.mxu0 0.0
  %670 = vmatpush2.msra.mxu0 0.0
  %671 = vmatprep.mubr.f32.mxu0 0.0
  %672 = vmatmul.mubr.f32.gmra.mxu0 %v605
  %v673 = vpop.f32.mrf.mxu0
  %v674 = vadd.f32 0.0, %v673
  %v675 = vpop.f32.mrf.mxu0
  %676 = vdwg.mxu0
  %v677 = vadd.f32 %v359, %v674
  %v678 = vxor.u32 %v677, 2147483648
  %v679 = vmul.f32 %v678, 1.442695
  %v680 = vpow.pop %v679
  %v681 = vadd.f32 %v680, 1.0
  %v682 = vrcp.pop %v681
  %v683 = vmul.f32 1.0, %v682
  %v684 = vadd.f32 %v674, %v478
  %686 = vrot.lane.b32.xlu0 %v684, 64
  %v687 = vpop.permute.xlu0 %686
  %v689 = vmul.f32 %v683, %v687
  %691 = vrot.lane.b32.xlu0 %v689, 64
  %v692 = vpop.permute.xlu0 %691
  %v694 = vadd.f32 %v359, %v692
  %v695 = vtanh.pop %v694
  %v696 = vsub.f32 1.0, %v683
  %698 = vrot.lane.b32.xlu0 %v695, 96
  %v699 = vpop.permute.xlu0 %698
  %v701 = vmul.f32 %v696, %v699
  %v702 = vmul.f32 %v683, %v601
  %v703 = vadd.f32 %v701, %v702
  %705 = vrot.lane.b32.xlu0 %v703, 96
  %v706 = vpop.permute.xlu0 %705
  %v707 = vsel %vm238, %v706, 0
  %709 = vmatprep.subr.mxu0 0.0
  %710 = vmatpush1.msra.mxu0 0.0
  %711 = vmatprep.subr.mxu0 0.0
  %712 = vmatpush1.msra.mxu0 0.0
  %713 = vmatprep.subr.mxu0 0.0
  %714 = vmatpush1.msra.mxu0 0.0
  %715 = vmatprep.subr.mxu0 0.0
  %716 = vmatpush1.msra.mxu0 0.0
  %717 = vmatprep.subr.mxu0 0.0
  %718 = vmatpush1.msra.mxu0 0.0
  %719 = vmatprep.subr.mxu0 0.0
  %720 = vmatpush1.msra.mxu0 0.0
  %721 = vmatprep.subr.mxu0 0.0
  %722 = vmatpush1.msra.mxu0 0.0
  %723 = vmatprep.subr.mxu0 0.0
  %724 = vmatpush1.msra.mxu0 0.0
  %725 = vmatprep.subr.mxu0 0.0
  %726 = vmatpush1.msra.mxu0 0.0
  %727 = vmatprep.subr.mxu0 0.0
  %728 = vmatpush1.msra.mxu0 0.0
  %729 = vmatprep.subr.mxu0 0.0
  %730 = vmatpush1.msra.mxu0 0.0
  %731 = vmatprep.subr.mxu0 0.0
  %732 = vmatpush1.msra.mxu0 0.0
  %733 = vmatprep.subr.mxu0 0.0
  %734 = vmatpush1.msra.mxu0 %v390
  %735 = vmatprep.subr.mxu0 0.0
  %736 = vmatpush1.msra.mxu0 %v389
  %737 = vmatprep.subr.mxu0 0.0
  %738 = vmatpush1.msra.mxu0 %v388
  %739 = vmatprep.subr.mxu0 0.0
  %740 = vmatpush1.msra.mxu0 %v387
  %741 = vmatprep.subr.mxu0 0.0
  %742 = vmatpush2.msra.mxu0 0.0
  %743 = vmatprep.subr.mxu0 0.0
  %744 = vmatpush2.msra.mxu0 0.0
  %745 = vmatprep.subr.mxu0 0.0
  %746 = vmatpush2.msra.mxu0 0.0
  %747 = vmatprep.subr.mxu0 0.0
  %748 = vmatpush2.msra.mxu0 0.0
  %749 = vmatprep.subr.mxu0 0.0
  %750 = vmatpush2.msra.mxu0 0.0
  %751 = vmatprep.subr.mxu0 0.0
  %752 = vmatpush2.msra.mxu0 0.0
  %753 = vmatprep.subr.mxu0 0.0
  %754 = vmatpush2.msra.mxu0 0.0
  %755 = vmatprep.subr.mxu0 0.0
  %756 = vmatpush2.msra.mxu0 0.0
  %757 = vmatprep.subr.mxu0 0.0
  %758 = vmatpush2.msra.mxu0 0.0
  %759 = vmatprep.subr.mxu0 0.0
  %760 = vmatpush2.msra.mxu0 0.0
  %761 = vmatprep.subr.mxu0 0.0
  %762 = vmatpush2.msra.mxu0 0.0
  %763 = vmatprep.subr.mxu0 0.0
  %764 = vmatpush2.msra.mxu0 0.0
  %765 = vmatprep.subr.mxu0 0.0
  %766 = vmatpush2.msra.mxu0 0.0
  %767 = vmatprep.subr.mxu0 0.0
  %768 = vmatpush2.msra.mxu0 0.0
  %769 = vmatprep.subr.mxu0 0.0
  %770 = vmatpush2.msra.mxu0 0.0
  %771 = vmatprep.subr.mxu0 0.0
  %772 = vmatpush2.msra.mxu0 0.0
  %773 = vmatprep.mubr.f32.mxu0 0.0
  %774 = vmatmul.mubr.f32.gmra.mxu0 %v707
  %v775 = vpop.f32.mrf.mxu0
  %v776 = vadd.f32 0.0, %v775
  %v777 = vpop.f32.mrf.mxu0
  %778 = vdwg.mxu0
  %v779 = vadd.f32 %v364, %v776
  %v780 = vxor.u32 %v779, 2147483648
  %v781 = vmul.f32 %v780, 1.442695
  %v782 = vpow.pop %v781
  %v783 = vadd.f32 %v782, 1.0
  %v784 = vrcp.pop %v783
  %v785 = vmul.f32 1.0, %v784
  %v786 = vadd.f32 %v776, %v478
  %788 = vrot.lane.b32.xlu0 %v786, 64
  %v789 = vpop.permute.xlu0 %788
  %v791 = vmul.f32 %v785, %v789
  %793 = vrot.lane.b32.xlu0 %v791, 64
  %v794 = vpop.permute.xlu0 %793
  %v796 = vadd.f32 %v364, %v794
  %v797 = vtanh.pop %v796
  %v798 = vsub.f32 1.0, %v785
  %800 = vrot.lane.b32.xlu0 %v797, 96
  %v801 = vpop.permute.xlu0 %800
  %v803 = vmul.f32 %v798, %v801
  %v804 = vmul.f32 %v785, %v703
  %v805 = vadd.f32 %v803, %v804
  %807 = vrot.lane.b32.xlu0 %v805, 96
  %v808 = vpop.permute.xlu0 %807
  %v809 = vsel %vm238, %v808, 0
  %811 = vmatprep.subr.mxu0 0.0
  %812 = vmatpush1.msra.mxu0 0.0
  %813 = vmatprep.subr.mxu0 0.0
  %814 = vmatpush1.msra.mxu0 0.0
  %815 = vmatprep.subr.mxu0 0.0
  %816 = vmatpush1.msra.mxu0 0.0
  %817 = vmatprep.subr.mxu0 0.0
  %818 = vmatpush1.msra.mxu0 0.0
  %819 = vmatprep.subr.mxu0 0.0
  %820 = vmatpush1.msra.mxu0 0.0
  %821 = vmatprep.subr.mxu0 0.0
  %822 = vmatpush1.msra.mxu0 0.0
  %823 = vmatprep.subr.mxu0 0.0
  %824 = vmatpush1.msra.mxu0 0.0
  %825 = vmatprep.subr.mxu0 0.0
  %826 = vmatpush1.msra.mxu0 0.0
  %827 = vmatprep.subr.mxu0 0.0
  %828 = vmatpush1.msra.mxu0 0.0
  %829 = vmatprep.subr.mxu0 0.0
  %830 = vmatpush1.msra.mxu0 0.0
  %831 = vmatprep.subr.mxu0 0.0
  %832 = vmatpush1.msra.mxu0 0.0
  %833 = vmatprep.subr.mxu0 0.0
  %834 = vmatpush1.msra.mxu0 0.0
  %835 = vmatprep.subr.mxu0 0.0
  %836 = vmatpush1.msra.mxu0 %v390
  %837 = vmatprep.subr.mxu0 0.0
  %838 = vmatpush1.msra.mxu0 %v389
  %839 = vmatprep.subr.mxu0 0.0
  %840 = vmatpush1.msra.mxu0 %v388
  %841 = vmatprep.subr.mxu0 0.0
  %842 = vmatpush1.msra.mxu0 %v387
  %843 = vmatprep.subr.mxu0 0.0
  %844 = vmatpush2.msra.mxu0 0.0
  %845 = vmatprep.subr.mxu0 0.0
  %846 = vmatpush2.msra.mxu0 0.0
  %847 = vmatprep.subr.mxu0 0.0
  %848 = vmatpush2.msra.mxu0 0.0
  %849 = vmatprep.subr.mxu0 0.0
  %850 = vmatpush2.msra.mxu0 0.0
  %851 = vmatprep.subr.mxu0 0.0
  %852 = vmatpush2.msra.mxu0 0.0
  %853 = vmatprep.subr.mxu0 0.0
  %854 = vmatpush2.msra.mxu0 0.0
  %855 = vmatprep.subr.mxu0 0.0
  %856 = vmatpush2.msra.mxu0 0.0
  %857 = vmatprep.subr.mxu0 0.0
  %858 = vmatpush2.msra.mxu0 0.0
  %859 = vmatprep.subr.mxu0 0.0
  %860 = vmatpush2.msra.mxu0 0.0
  %861 = vmatprep.subr.mxu0 0.0
  %862 = vmatpush2.msra.mxu0 0.0
  %863 = vmatprep.subr.mxu0 0.0
  %864 = vmatpush2.msra.mxu0 0.0
  %865 = vmatprep.subr.mxu0 0.0
  %866 = vmatpush2.msra.mxu0 0.0
  %867 = vmatprep.subr.mxu0 0.0
  %868 = vmatpush2.msra.mxu0 0.0
  %869 = vmatprep.subr.mxu0 0.0
  %870 = vmatpush2.msra.mxu0 0.0
  %871 = vmatprep.subr.mxu0 0.0
  %872 = vmatpush2.msra.mxu0 0.0
  %873 = vmatprep.subr.mxu0 0.0
  %874 = vmatpush2.msra.mxu0 0.0
  %875 = vmatprep.mubr.f32.mxu0 0.0
  %876 = vmatmul.mubr.f32.gmra.mxu0 %v809
  %v877 = vpop.f32.mrf.mxu0
  %v878 = vadd.f32 0.0, %v877
  %v879 = vpop.f32.mrf.mxu0
  %880 = vdwg.mxu0
  %v881 = vadd.f32 %v369, %v878
  %v882 = vxor.u32 %v881, 2147483648
  %v883 = vmul.f32 %v882, 1.442695
  %v884 = vpow.pop %v883
  %v885 = vadd.f32 %v884, 1.0
  %v886 = vrcp.pop %v885
  %v887 = vmul.f32 1.0, %v886
  %v888 = vadd.f32 %v878, %v478
  %890 = vrot.lane.b32.xlu0 %v888, 64
  %v891 = vpop.permute.xlu0 %890
  %v893 = vmul.f32 %v887, %v891
  %895 = vrot.lane.b32.xlu0 %v893, 64
  %v896 = vpop.permute.xlu0 %895
  %v898 = vadd.f32 %v369, %v896
  %v899 = vtanh.pop %v898
  %v900 = vsub.f32 1.0, %v887
  %902 = vrot.lane.b32.xlu0 %v899, 96
  %v903 = vpop.permute.xlu0 %902
  %v905 = vmul.f32 %v900, %v903
  %v906 = vmul.f32 %v887, %v805
  %v907 = vadd.f32 %v905, %v906
  %909 = vrot.lane.b32.xlu0 %v907, 96
  %v910 = vpop.permute.xlu0 %909
  %v911 = vsel %vm238, %v910, 0
  %913 = vmatprep.subr.mxu0 0.0
  %914 = vmatpush1.msra.mxu0 0.0
  %915 = vmatprep.subr.mxu0 0.0
  %916 = vmatpush1.msra.mxu0 0.0
  %917 = vmatprep.subr.mxu0 0.0
  %918 = vmatpush1.msra.mxu0 0.0
  %919 = vmatprep.subr.mxu0 0.0
  %920 = vmatpush1.msra.mxu0 0.0
  %921 = vmatprep.subr.mxu0 0.0
  %922 = vmatpush1.msra.mxu0 0.0
  %923 = vmatprep.subr.mxu0 0.0
  %924 = vmatpush1.msra.mxu0 0.0
  %925 = vmatprep.subr.mxu0 0.0
  %926 = vmatpush1.msra.mxu0 0.0
  %927 = vmatprep.subr.mxu0 0.0
  %928 = vmatpush1.msra.mxu0 0.0
  %929 = vmatprep.subr.mxu0 0.0
  %930 = vmatpush1.msra.mxu0 0.0
  %931 = vmatprep.subr.mxu0 0.0
  %932 = vmatpush1.msra.mxu0 0.0
  %933 = vmatprep.subr.mxu0 0.0
  %934 = vmatpush1.msra.mxu0 0.0
  %935 = vmatprep.subr.mxu0 0.0
  %936 = vmatpush1.msra.mxu0 0.0
  %937 = vmatprep.subr.mxu0 0.0
  %938 = vmatpush1.msra.mxu0 %v390
  %939 = vmatprep.subr.mxu0 0.0
  %940 = vmatpush1.msra.mxu0 %v389
  %941 = vmatprep.subr.mxu0 0.0
  %942 = vmatpush1.msra.mxu0 %v388
  %943 = vmatprep.subr.mxu0 0.0
  %944 = vmatpush1.msra.mxu0 %v387
  %945 = vmatprep.subr.mxu0 0.0
  %946 = vmatpush2.msra.mxu0 0.0
  %947 = vmatprep.subr.mxu0 0.0
  %948 = vmatpush2.msra.mxu0 0.0
  %949 = vmatprep.subr.mxu0 0.0
  %950 = vmatpush2.msra.mxu0 0.0
  %951 = vmatprep.subr.mxu0 0.0
  %952 = vmatpush2.msra.mxu0 0.0
  %953 = vmatprep.subr.mxu0 0.0
  %954 = vmatpush2.msra.mxu0 0.0
  %955 = vmatprep.subr.mxu0 0.0
  %956 = vmatpush2.msra.mxu0 0.0
  %957 = vmatprep.subr.mxu0 0.0
  %958 = vmatpush2.msra.mxu0 0.0
  %959 = vmatprep.subr.mxu0 0.0
  %960 = vmatpush2.msra.mxu0 0.0
  %961 = vmatprep.subr.mxu0 0.0
  %962 = vmatpush2.msra.mxu0 0.0
  %963 = vmatprep.subr.mxu0 0.0
  %964 = vmatpush2.msra.mxu0 0.0
  %965 = vmatprep.subr.mxu0 0.0
  %966 = vmatpush2.msra.mxu0 0.0
  %967 = vmatprep.subr.mxu0 0.0
  %968 = vmatpush2.msra.mxu0 0.0
  %969 = vmatprep.subr.mxu0 0.0
  %970 = vmatpush2.msra.mxu0 0.0
  %971 = vmatprep.subr.mxu0 0.0
  %972 = vmatpush2.msra.mxu0 0.0
  %973 = vmatprep.subr.mxu0 0.0
  %974 = vmatpush2.msra.mxu0 0.0
  %975 = vmatprep.subr.mxu0 0.0
  %976 = vmatpush2.msra.mxu0 0.0
  %977 = vmatprep.mubr.f32.mxu0 0.0
  %978 = vmatmul.mubr.f32.gmra.mxu0 %v911
  %v979 = vpop.f32.mrf.mxu0
  %v980 = vadd.f32 0.0, %v979
  %v981 = vpop.f32.mrf.mxu0
  %982 = vdwg.mxu0
  %v983 = vadd.f32 %v374, %v980
  %v984 = vxor.u32 %v983, 2147483648
  %v985 = vmul.f32 %v984, 1.442695
  %v986 = vpow.pop %v985
  %v987 = vadd.f32 %v986, 1.0
  %v988 = vrcp.pop %v987
  %v989 = vmul.f32 1.0, %v988
  %v990 = vadd.f32 %v980, %v478
  %992 = vrot.lane.b32.xlu0 %v990, 64
  %v993 = vpop.permute.xlu0 %992
  %v995 = vmul.f32 %v989, %v993
  %997 = vrot.lane.b32.xlu0 %v995, 64
  %v998 = vpop.permute.xlu0 %997
  %v1000 = vadd.f32 %v374, %v998
  %v1001 = vtanh.pop %v1000
  %v1002 = vsub.f32 1.0, %v989
  %1004 = vrot.lane.b32.xlu0 %v1001, 96
  %v1005 = vpop.permute.xlu0 %1004
  %v1007 = vmul.f32 %v1002, %v1005
  %v1008 = vmul.f32 %v989, %v907
  %v1009 = vadd.f32 %v1007, %v1008
  %1011 = vrot.lane.b32.xlu0 %v1009, 96
  %v1012 = vpop.permute.xlu0 %1011
  %v1013 = vsel %vm238, %v1012, 0
  %1015 = vmatprep.subr.mxu0 0.0
  %1016 = vmatpush1.msra.mxu0 0.0
  %1017 = vmatprep.subr.mxu0 0.0
  %1018 = vmatpush1.msra.mxu0 0.0
  %1019 = vmatprep.subr.mxu0 0.0
  %1020 = vmatpush1.msra.mxu0 0.0
  %1021 = vmatprep.subr.mxu0 0.0
  %1022 = vmatpush1.msra.mxu0 0.0
  %1023 = vmatprep.subr.mxu0 0.0
  %1024 = vmatpush1.msra.mxu0 0.0
  %1025 = vmatprep.subr.mxu0 0.0
  %1026 = vmatpush1.msra.mxu0 0.0
  %1027 = vmatprep.subr.mxu0 0.0
  %1028 = vmatpush1.msra.mxu0 0.0
  %1029 = vmatprep.subr.mxu0 0.0
  %1030 = vmatpush1.msra.mxu0 0.0
  %1031 = vmatprep.subr.mxu0 0.0
  %1032 = vmatpush1.msra.mxu0 0.0
  %1033 = vmatprep.subr.mxu0 0.0
  %1034 = vmatpush1.msra.mxu0 0.0
  %1035 = vmatprep.subr.mxu0 0.0
  %1036 = vmatpush1.msra.mxu0 0.0
  %1037 = vmatprep.subr.mxu0 0.0
  %1038 = vmatpush1.msra.mxu0 0.0
  %1039 = vmatprep.subr.mxu0 0.0
  %1040 = vmatpush1.msra.mxu0 %v390
  %1041 = vmatprep.subr.mxu0 0.0
  %1042 = vmatpush1.msra.mxu0 %v389
  %1043 = vmatprep.subr.mxu0 0.0
  %1044 = vmatpush1.msra.mxu0 %v388
  %1045 = vmatprep.subr.mxu0 0.0
  %1046 = vmatpush1.msra.mxu0 %v387
  %1047 = vmatprep.subr.mxu0 0.0
  %1048 = vmatpush2.msra.mxu0 0.0
  %1049 = vmatprep.subr.mxu0 0.0
  %1050 = vmatpush2.msra.mxu0 0.0
  %1051 = vmatprep.subr.mxu0 0.0
  %1052 = vmatpush2.msra.mxu0 0.0
  %1053 = vmatprep.subr.mxu0 0.0
  %1054 = vmatpush2.msra.mxu0 0.0
  %1055 = vmatprep.subr.mxu0 0.0
  %1056 = vmatpush2.msra.mxu0 0.0
  %1057 = vmatprep.subr.mxu0 0.0
  %1058 = vmatpush2.msra.mxu0 0.0
  %1059 = vmatprep.subr.mxu0 0.0
  %1060 = vmatpush2.msra.mxu0 0.0
  %1061 = vmatprep.subr.mxu0 0.0
  %1062 = vmatpush2.msra.mxu0 0.0
  %1063 = vmatprep.subr.mxu0 0.0
  %1064 = vmatpush2.msra.mxu0 0.0
  %1065 = vmatprep.subr.mxu0 0.0
  %1066 = vmatpush2.msra.mxu0 0.0
  %1067 = vmatprep.subr.mxu0 0.0
  %1068 = vmatpush2.msra.mxu0 0.0
  %1069 = vmatprep.subr.mxu0 0.0
  %1070 = vmatpush2.msra.mxu0 0.0
  %1071 = vmatprep.subr.mxu0 0.0
  %1072 = vmatpush2.msra.mxu0 0.0
  %1073 = vmatprep.subr.mxu0 0.0
  %1074 = vmatpush2.msra.mxu0 0.0
  %1075 = vmatprep.subr.mxu0 0.0
  %1076 = vmatpush2.msra.mxu0 0.0
  %1077 = vmatprep.subr.mxu0 0.0
  %1078 = vmatpush2.msra.mxu0 0.0
  %1079 = vmatprep.mubr.f32.mxu0 0.0
  %1080 = vmatmul.mubr.f32.gmra.mxu0 %v1013
  %v1081 = vpop.f32.mrf.mxu0
  %v1082 = vadd.f32 0.0, %v1081
  %v1083 = vpop.f32.mrf.mxu0
  %1084 = vdwg.mxu0
  %v1085 = vadd.f32 %v379, %v1082
  %v1086 = vxor.u32 %v1085, 2147483648
  %v1087 = vmul.f32 %v1086, 1.442695
  %v1088 = vpow.pop %v1087
  %v1089 = vadd.f32 %v1088, 1.0
  %v1090 = vrcp.pop %v1089
  %v1091 = vmul.f32 1.0, %v1090
  %v1092 = vadd.f32 %v1082, %v478
  %1094 = vrot.lane.b32.xlu0 %v1092, 64
  %v1095 = vpop.permute.xlu0 %1094
  %v1097 = vmul.f32 %v1091, %v1095
  %1099 = vrot.lane.b32.xlu0 %v1097, 64
  %v1100 = vpop.permute.xlu0 %1099
  %v1102 = vadd.f32 %v379, %v1100
  %v1103 = vtanh.pop %v1102
  %v1104 = vsub.f32 1.0, %v1091
  %1106 = vrot.lane.b32.xlu0 %v1103, 96
  %v1107 = vpop.permute.xlu0 %1106
  %v1109 = vmul.f32 %v1104, %v1107
  %v1110 = vmul.f32 %v1091, %v1009
  %v1111 = vadd.f32 %v1109, %v1110
  %1113 = vrot.lane.b32.xlu0 %v1111, 96
  %v1114 = vpop.permute.xlu0 %1113
  %v1115 = vsel %vm238, %v1114, 0
  %1117 = vmatprep.subr.mxu0 0.0
  %1118 = vmatpush1.msra.mxu0 0.0
  %1119 = vmatprep.subr.mxu0 0.0
  %1120 = vmatpush1.msra.mxu0 0.0
  %1121 = vmatprep.subr.mxu0 0.0
  %1122 = vmatpush1.msra.mxu0 0.0
  %1123 = vmatprep.subr.mxu0 0.0
  %1124 = vmatpush1.msra.mxu0 0.0
  %1125 = vmatprep.subr.mxu0 0.0
  %1126 = vmatpush1.msra.mxu0 0.0
  %1127 = vmatprep.subr.mxu0 0.0
  %1128 = vmatpush1.msra.mxu0 0.0
  %1129 = vmatprep.subr.mxu0 0.0
  %1130 = vmatpush1.msra.mxu0 0.0
  %1131 = vmatprep.subr.mxu0 0.0
  %1132 = vmatpush1.msra.mxu0 0.0
  %1133 = vmatprep.subr.mxu0 0.0
  %1134 = vmatpush1.msra.mxu0 0.0
  %1135 = vmatprep.subr.mxu0 0.0
  %1136 = vmatpush1.msra.mxu0 0.0
  %1137 = vmatprep.subr.mxu0 0.0
  %1138 = vmatpush1.msra.mxu0 0.0
  %1139 = vmatprep.subr.mxu0 0.0
  %1140 = vmatpush1.msra.mxu0 0.0
  %1141 = vmatprep.subr.mxu0 0.0
  %1142 = vmatpush1.msra.mxu0 %v390
  %1143 = vmatprep.subr.mxu0 0.0
  %1144 = vmatpush1.msra.mxu0 %v389
  %1145 = vmatprep.subr.mxu0 0.0
  %1146 = vmatpush1.msra.mxu0 %v388
  %1147 = vmatprep.subr.mxu0 0.0
  %1148 = vmatpush1.msra.mxu0 %v387
  %1149 = vmatprep.subr.mxu0 0.0
  %1150 = vmatpush2.msra.mxu0 0.0
  %1151 = vmatprep.subr.mxu0 0.0
  %1152 = vmatpush2.msra.mxu0 0.0
  %1153 = vmatprep.subr.mxu0 0.0
  %1154 = vmatpush2.msra.mxu0 0.0
  %1155 = vmatprep.subr.mxu0 0.0
  %1156 = vmatpush2.msra.mxu0 0.0
  %1157 = vmatprep.subr.mxu0 0.0
  %1158 = vmatpush2.msra.mxu0 0.0
  %1159 = vmatprep.subr.mxu0 0.0
  %1160 = vmatpush2.msra.mxu0 0.0
  %1161 = vmatprep.subr.mxu0 0.0
  %1162 = vmatpush2.msra.mxu0 0.0
  %1163 = vmatprep.subr.mxu0 0.0
  %1164 = vmatpush2.msra.mxu0 0.0
  %1165 = vmatprep.subr.mxu0 0.0
  %1166 = vmatpush2.msra.mxu0 0.0
  %1167 = vmatprep.subr.mxu0 0.0
  %1168 = vmatpush2.msra.mxu0 0.0
  %1169 = vmatprep.subr.mxu0 0.0
  %1170 = vmatpush2.msra.mxu0 0.0
  %1171 = vmatprep.subr.mxu0 0.0
  %1172 = vmatpush2.msra.mxu0 0.0
  %1173 = vmatprep.subr.mxu0 0.0
  %1174 = vmatpush2.msra.mxu0 0.0
  %1175 = vmatprep.subr.mxu0 0.0
  %1176 = vmatpush2.msra.mxu0 0.0
  %1177 = vmatprep.subr.mxu0 0.0
  %1178 = vmatpush2.msra.mxu0 0.0
  %1179 = vmatprep.subr.mxu0 0.0
  %1180 = vmatpush2.msra.mxu0 0.0
  %1181 = vmatprep.mubr.f32.mxu0 0.0
  %1182 = vmatmul.mubr.f32.gmra.mxu0 %v1115
  %v1183 = vpop.f32.mrf.mxu0
  %v1184 = vadd.f32 0.0, %v1183
  %v1185 = vpop.f32.mrf.mxu0
  %1186 = vdwg.mxu0
  %v1187 = vadd.f32 %v384, %v1184
  %v1188 = vxor.u32 %v1187, 2147483648
  %v1189 = vmul.f32 %v1188, 1.442695
  %v1190 = vpow.pop %v1189
  %v1191 = vadd.f32 %v1190, 1.0
  %v1192 = vrcp.pop %v1191
  %v1193 = vmul.f32 1.0, %v1192
  %v1194 = vadd.f32 %v1184, %v478
  %1196 = vrot.lane.b32.xlu0 %v1194, 64
  %v1197 = vpop.permute.xlu0 %1196
  %v1199 = vmul.f32 %v1193, %v1197
  %1201 = vrot.lane.b32.xlu0 %v1199, 64
  %v1202 = vpop.permute.xlu0 %1201
  %v1204 = vadd.f32 %v384, %v1202
  %v1205 = vtanh.pop %v1204
  %v1206 = vsub.f32 1.0, %v1193
  %1208 = vrot.lane.b32.xlu0 %v1205, 96
  %v1209 = vpop.permute.xlu0 %1208
  %v1211 = vmul.f32 %v1206, %v1209
  %v1212 = vmul.f32 %v1193, %v1111
  %v1213 = vadd.f32 %v1211, %v1212
  %1215 = vrot.lane.b32.xlu0 %v1213, 96
  %v1216 = vpop.permute.xlu0 %1215
  %1225 = vst.msk [vmem:[%s13] sm:$0xff] %vm238, %v502
  %1226 = vst.msk [vmem:[%s13 + $0x8] sm:$0xff] %vm238, %v604
  %1227 = vst.msk [vmem:[%s13 + $0x10] sm:$0xff] %vm238, %v706
  %1228 = vst.msk [vmem:[%s13 + $0x18] sm:$0xff] %vm238, %v808
  %1229 = vst.msk [vmem:[%s13 + $0x20] sm:$0xff] %vm238, %v910
  %1230 = vst.msk [vmem:[%s13 + $0x28] sm:$0xff] %vm238, %v1012
  %1231 = vst.msk [vmem:[%s13 + $0x30] sm:$0xff] %vm238, %v1114
  %1232 = vst.msk [vmem:[%s13 + $0x38] sm:$0xff] %vm238, %v1216
  %v1233 = vld [vmem:[%s6] sm:$0xff]
  %v1234 = vld [vmem:[%s6 + $0x8] sm:$0xff]
  %v1235 = vld [vmem:[%s6 + $0x10] sm:$0xff]
  %v1236 = vld [vmem:[%s6 + $0x18] sm:$0xff]
  %v1237 = vld [vmem:[%s7] sm:$0x1]
  %v1239 = vlaneseq
  %v1240 = vshrl.u32 %v1239, 7
  %v1241 = vsub.s32 0, %v1240
  %v1242 = vrot.slane %v1237, %v1241
  %v1244 = vsel %vm238, %v1216, 0
  %1246 = vmatprep.subr.mxu0 0.0
  %1247 = vmatpush1.msra.mxu0 0.0
  %1248 = vmatprep.subr.mxu0 0.0
  %1249 = vmatpush1.msra.mxu0 0.0
  %1250 = vmatprep.subr.mxu0 0.0
  %1251 = vmatpush1.msra.mxu0 0.0
  %1252 = vmatprep.subr.mxu0 0.0
  %1253 = vmatpush1.msra.mxu0 0.0
  %1254 = vmatprep.subr.mxu0 0.0
  %1255 = vmatpush1.msra.mxu0 0.0
  %1256 = vmatprep.subr.mxu0 0.0
  %1257 = vmatpush1.msra.mxu0 0.0
  %1258 = vmatprep.subr.mxu0 0.0
  %1259 = vmatpush1.msra.mxu0 0.0
  %1260 = vmatprep.subr.mxu0 0.0
  %1261 = vmatpush1.msra.mxu0 0.0
  %1262 = vmatprep.subr.mxu0 0.0
  %1263 = vmatpush1.msra.mxu0 0.0
  %1264 = vmatprep.subr.mxu0 0.0
  %1265 = vmatpush1.msra.mxu0 0.0
  %1266 = vmatprep.subr.mxu0 0.0
  %1267 = vmatpush1.msra.mxu0 0.0
  %1268 = vmatprep.subr.mxu0 0.0
  %1269 = vmatpush1.msra.mxu0 0.0
  %1270 = vmatprep.subr.mxu0 0.0
  %1271 = vmatpush1.msra.mxu0 %v1236
  %1272 = vmatprep.subr.mxu0 0.0
  %1273 = vmatpush1.msra.mxu0 %v1235
  %1274 = vmatprep.subr.mxu0 0.0
  %1275 = vmatpush1.msra.mxu0 %v1234
  %1276 = vmatprep.subr.mxu0 0.0
  %1277 = vmatpush1.msra.mxu0 %v1233
  %1278 = vmatprep.subr.mxu0 0.0
  %1279 = vmatpush2.msra.mxu0 0.0
  %1280 = vmatprep.subr.mxu0 0.0
  %1281 = vmatpush2.msra.mxu0 0.0
  %1282 = vmatprep.subr.mxu0 0.0
  %1283 = vmatpush2.msra.mxu0 0.0
  %1284 = vmatprep.subr.mxu0 0.0
  %1285 = vmatpush2.msra.mxu0 0.0
  %1286 = vmatprep.subr.mxu0 0.0
  %1287 = vmatpush2.msra.mxu0 0.0
  %1288 = vmatprep.subr.mxu0 0.0
  %1289 = vmatpush2.msra.mxu0 0.0
  %1290 = vmatprep.subr.mxu0 0.0
  %1291 = vmatpush2.msra.mxu0 0.0
  %1292 = vmatprep.subr.mxu0 0.0
  %1293 = vmatpush2.msra.mxu0 0.0
  %1294 = vmatprep.subr.mxu0 0.0
  %1295 = vmatpush2.msra.mxu0 0.0
  %1296 = vmatprep.subr.mxu0 0.0
  %1297 = vmatpush2.msra.mxu0 0.0
  %1298 = vmatprep.subr.mxu0 0.0
  %1299 = vmatpush2.msra.mxu0 0.0
  %1300 = vmatprep.subr.mxu0 0.0
  %1301 = vmatpush2.msra.mxu0 0.0
  %1302 = vmatprep.subr.mxu0 0.0
  %1303 = vmatpush2.msra.mxu0 0.0
  %1304 = vmatprep.subr.mxu0 0.0
  %1305 = vmatpush2.msra.mxu0 0.0
  %1306 = vmatprep.subr.mxu0 0.0
  %1307 = vmatpush2.msra.mxu0 0.0
  %1308 = vmatprep.subr.mxu0 0.0
  %1309 = vmatpush2.msra.mxu0 0.0
  %1310 = vmatprep.mubr.f32.mxu0 0.0
  %1311 = vmatmul.mubr.f32.gmra.mxu0 %v503
  %v1312 = vpop.f32.mrf.mxu0
  %v1313 = vadd.f32 %v1242, %v1312
  %v1314 = vpop.f32.mrf.mxu0
  %1315 = vmatprep.mubr.f32.mxu0 0.0
  %1316 = vmatmul.mubr.f32.gmra.mxu0 %v605
  %v1317 = vpop.f32.mrf.mxu0
  %v1318 = vadd.f32 %v1242, %v1317
  %v1319 = vpop.f32.mrf.mxu0
  %1320 = vmatprep.mubr.f32.mxu0 0.0
  %1321 = vmatmul.mubr.f32.gmra.mxu0 %v707
  %v1322 = vpop.f32.mrf.mxu0
  %v1323 = vadd.f32 %v1242, %v1322
  %v1324 = vpop.f32.mrf.mxu0
  %1325 = vmatprep.mubr.f32.mxu0 0.0
  %1326 = vmatmul.mubr.f32.gmra.mxu0 %v809
  %v1327 = vpop.f32.mrf.mxu0
  %v1328 = vadd.f32 %v1242, %v1327
  %v1329 = vpop.f32.mrf.mxu0
  %1330 = vmatprep.mubr.f32.mxu0 0.0
  %1331 = vmatmul.mubr.f32.gmra.mxu0 %v911
  %v1332 = vpop.f32.mrf.mxu0
  %v1333 = vadd.f32 %v1242, %v1332
  %v1334 = vpop.f32.mrf.mxu0
  %1335 = vmatprep.mubr.f32.mxu0 0.0
  %1336 = vmatmul.mubr.f32.gmra.mxu0 %v1013
  %v1337 = vpop.f32.mrf.mxu0
  %v1338 = vadd.f32 %v1242, %v1337
  %v1339 = vpop.f32.mrf.mxu0
  %1340 = vmatprep.mubr.f32.mxu0 0.0
  %1341 = vmatmul.mubr.f32.gmra.mxu0 %v1115
  %v1342 = vpop.f32.mrf.mxu0
  %v1343 = vadd.f32 %v1242, %v1342
  %v1344 = vpop.f32.mrf.mxu0
  %1345 = vmatprep.mubr.f32.mxu0 0.0
  %1346 = vmatmul.mubr.f32.gmra.mxu0 %v1244
  %v1347 = vpop.f32.mrf.mxu0
  %v1348 = vadd.f32 %v1242, %v1347
  %v1349 = vpop.f32.mrf.mxu0
  %1350 = vdwg.mxu0
  %v1351 = vtanh.pop %v1313
  %v1352 = vtanh.pop %v1318
  %v1353 = vtanh.pop %v1323
  %v1354 = vtanh.pop %v1328
  %v1355 = vtanh.pop %v1333
  %v1356 = vtanh.pop %v1338
  %v1357 = vtanh.pop %v1343
  %v1358 = vtanh.pop %v1348
  %v1359 = vld [vmem:[%s8] sm:$0xff]
  %v1360 = vld [vmem:[%s8 + $0x8] sm:$0xff]
  %v1361 = vld [vmem:[%s8 + $0x10] sm:$0xff]
  %v1362 = vld [vmem:[%s8 + $0x18] sm:$0xff]
  %v1363 = vld [vmem:[%s9] sm:$0x1]
  %v1365 = vlaneseq
  %v1366 = vshrl.u32 %v1365, 7
  %v1367 = vsub.s32 0, %v1366
  %v1368 = vrot.slane %v1363, %v1367
  %v1371 = vsel %vm238, %v1351, 0
  %v1374 = vsel %vm238, %v1352, 0
  %v1377 = vsel %vm238, %v1353, 0
  %v1380 = vsel %vm238, %v1354, 0
  %v1383 = vsel %vm238, %v1355, 0
  %v1386 = vsel %vm238, %v1356, 0
  %v1389 = vsel %vm238, %v1357, 0
  %v1392 = vsel %vm238, %v1358, 0
  %1394 = vmatprep.subr.mxu0 0.0
  %1395 = vmatpush1.msra.mxu0 0.0
  %1396 = vmatprep.subr.mxu0 0.0
  %1397 = vmatpush1.msra.mxu0 0.0
  %1398 = vmatprep.subr.mxu0 0.0
  %1399 = vmatpush1.msra.mxu0 0.0
  %1400 = vmatprep.subr.mxu0 0.0
  %1401 = vmatpush1.msra.mxu0 0.0
  %1402 = vmatprep.subr.mxu0 0.0
  %1403 = vmatpush1.msra.mxu0 0.0
  %1404 = vmatprep.subr.mxu0 0.0
  %1405 = vmatpush1.msra.mxu0 0.0
  %1406 = vmatprep.subr.mxu0 0.0
  %1407 = vmatpush1.msra.mxu0 0.0
  %1408 = vmatprep.subr.mxu0 0.0
  %1409 = vmatpush1.msra.mxu0 0.0
  %1410 = vmatprep.subr.mxu0 0.0
  %1411 = vmatpush1.msra.mxu0 0.0
  %1412 = vmatprep.subr.mxu0 0.0
  %1413 = vmatpush1.msra.mxu0 0.0
  %1414 = vmatprep.subr.mxu0 0.0
  %1415 = vmatpush1.msra.mxu0 0.0
  %1416 = vmatprep.subr.mxu0 0.0
  %1417 = vmatpush1.msra.mxu0 0.0
  %1418 = vmatprep.subr.mxu0 0.0
  %1419 = vmatpush1.msra.mxu0 %v1362
  %1420 = vmatprep.subr.mxu0 0.0
  %1421 = vmatpush1.msra.mxu0 %v1361
  %1422 = vmatprep.subr.mxu0 0.0
  %1423 = vmatpush1.msra.mxu0 %v1360
  %1424 = vmatprep.subr.mxu0 0.0
  %1425 = vmatpush1.msra.mxu0 %v1359
  %1426 = vmatprep.subr.mxu0 0.0
  %1427 = vmatpush2.msra.mxu0 0.0
  %1428 = vmatprep.subr.mxu0 0.0
  %1429 = vmatpush2.msra.mxu0 0.0
  %1430 = vmatprep.subr.mxu0 0.0
  %1431 = vmatpush2.msra.mxu0 0.0
  %1432 = vmatprep.subr.mxu0 0.0
  %1433 = vmatpush2.msra.mxu0 0.0
  %1434 = vmatprep.subr.mxu0 0.0
  %1435 = vmatpush2.msra.mxu0 0.0
  %1436 = vmatprep.subr.mxu0 0.0
  %1437 = vmatpush2.msra.mxu0 0.0
  %1438 = vmatprep.subr.mxu0 0.0
  %1439 = vmatpush2.msra.mxu0 0.0
  %1440 = vmatprep.subr.mxu0 0.0
  %1441 = vmatpush2.msra.mxu0 0.0
  %1442 = vmatprep.subr.mxu0 0.0
  %1443 = vmatpush2.msra.mxu0 0.0
  %1444 = vmatprep.subr.mxu0 0.0
  %1445 = vmatpush2.msra.mxu0 0.0
  %1446 = vmatprep.subr.mxu0 0.0
  %1447 = vmatpush2.msra.mxu0 0.0
  %1448 = vmatprep.subr.mxu0 0.0
  %1449 = vmatpush2.msra.mxu0 0.0
  %1450 = vmatprep.subr.mxu0 0.0
  %1451 = vmatpush2.msra.mxu0 0.0
  %1452 = vmatprep.subr.mxu0 0.0
  %1453 = vmatpush2.msra.mxu0 0.0
  %1454 = vmatprep.subr.mxu0 0.0
  %1455 = vmatpush2.msra.mxu0 0.0
  %1456 = vmatprep.subr.mxu0 0.0
  %1457 = vmatpush2.msra.mxu0 0.0
  %1458 = vmatprep.mubr.f32.mxu0 0.0
  %1459 = vmatmul.mubr.f32.gmra.mxu0 %v1371
  %v1460 = vpop.f32.mrf.mxu0
  %v1461 = vadd.f32 %v1368, %v1460
  %v1462 = vpop.f32.mrf.mxu0
  %1463 = vmatprep.mubr.f32.mxu0 0.0
  %1464 = vmatmul.mubr.f32.gmra.mxu0 %v1374
  %v1465 = vpop.f32.mrf.mxu0
  %v1466 = vadd.f32 %v1368, %v1465
  %v1467 = vpop.f32.mrf.mxu0
  %1468 = vmatprep.mubr.f32.mxu0 0.0
  %1469 = vmatmul.mubr.f32.gmra.mxu0 %v1377
  %v1470 = vpop.f32.mrf.mxu0
  %v1471 = vadd.f32 %v1368, %v1470
  %v1472 = vpop.f32.mrf.mxu0
  %1473 = vmatprep.mubr.f32.mxu0 0.0
  %1474 = vmatmul.mubr.f32.gmra.mxu0 %v1380
  %v1475 = vpop.f32.mrf.mxu0
  %v1476 = vadd.f32 %v1368, %v1475
  %v1477 = vpop.f32.mrf.mxu0
  %1478 = vmatprep.mubr.f32.mxu0 0.0
  %1479 = vmatmul.mubr.f32.gmra.mxu0 %v1383
  %v1480 = vpop.f32.mrf.mxu0
  %v1481 = vadd.f32 %v1368, %v1480
  %v1482 = vpop.f32.mrf.mxu0
  %1483 = vmatprep.mubr.f32.mxu0 0.0
  %1484 = vmatmul.mubr.f32.gmra.mxu0 %v1386
  %v1485 = vpop.f32.mrf.mxu0
  %v1486 = vadd.f32 %v1368, %v1485
  %v1487 = vpop.f32.mrf.mxu0
  %1488 = vmatprep.mubr.f32.mxu0 0.0
  %1489 = vmatmul.mubr.f32.gmra.mxu0 %v1389
  %v1490 = vpop.f32.mrf.mxu0
  %v1491 = vadd.f32 %v1368, %v1490
  %v1492 = vpop.f32.mrf.mxu0
  %1493 = vmatprep.mubr.f32.mxu0 0.0
  %1494 = vmatmul.mubr.f32.gmra.mxu0 %v1392
  %v1495 = vpop.f32.mrf.mxu0
  %v1496 = vadd.f32 %v1368, %v1495
  %v1497 = vpop.f32.mrf.mxu0
  %1498 = vdwg.mxu0
  %vm1499 = vcmask 39936
  %1500 = vst.msk [vmem:[%s15] sm:$0xff] %vm1499, %v1461
  %1501 = vst.msk [vmem:[%s15 + $0x8] sm:$0xff] %vm1499, %v1466
  %1502 = vst.msk [vmem:[%s15 + $0x10] sm:$0xff] %vm1499, %v1471
  %1503 = vst.msk [vmem:[%s15 + $0x18] sm:$0xff] %vm1499, %v1476
  %1504 = vst.msk [vmem:[%s15 + $0x20] sm:$0xff] %vm1499, %v1481
  %1505 = vst.msk [vmem:[%s15 + $0x28] sm:$0xff] %vm1499, %v1486
  %1506 = vst.msk [vmem:[%s15 + $0x30] sm:$0xff] %vm1499, %v1491
  %1507 = vst.msk [vmem:[%s15 + $0x38] sm:$0xff] %vm1499, %v1496
  %v1508 = vld [vmem:[%s10] sm:$0x1]
  %v1510 = vlaneseq
  %v1511 = vshrl.u32 %v1510, 7
  %v1512 = vsub.s32 0, %v1511
  %v1513 = vrot.slane %v1508, %v1512
  %v1515 = vmul.f32 %v1461, %v1513
  %v1516 = vmul.f32 %v1466, %v1513
  %v1517 = vmul.f32 %v1471, %v1513
  %v1518 = vmul.f32 %v1476, %v1513
  %v1519 = vmul.f32 %v1481, %v1513
  %v1520 = vmul.f32 %v1486, %v1513
  %v1521 = vmul.f32 %v1491, %v1513
  %v1522 = vmul.f32 %v1496, %v1513
  %v1523 = vsel %vm1499, %v1515, 0.0
  %1524 = vadd.xlane.f32.xlu0 %v1523
  %v1525 = vpop.xlane.xlu0 %1524
  %v1526 = vsel %vm1499, %v1516, 0.0
  %1527 = vadd.xlane.f32.xlu0 %v1526
  %v1528 = vpop.xlane.xlu0 %1527
  %v1529 = vsel %vm1499, %v1517, 0.0
  %1530 = vadd.xlane.f32.xlu0 %v1529
  %v1531 = vpop.xlane.xlu0 %1530
  %v1532 = vsel %vm1499, %v1518, 0.0
  %1533 = vadd.xlane.f32.xlu0 %v1532
  %v1534 = vpop.xlane.xlu0 %1533
  %v1535 = vsel %vm1499, %v1519, 0.0
  %1536 = vadd.xlane.f32.xlu0 %v1535
  %v1537 = vpop.xlane.xlu0 %1536
  %v1538 = vsel %vm1499, %v1520, 0.0
  %1539 = vadd.xlane.f32.xlu0 %v1538
  %v1540 = vpop.xlane.xlu0 %1539
  %v1541 = vsel %vm1499, %v1521, 0.0
  %1542 = vadd.xlane.f32.xlu0 %v1541
  %v1543 = vpop.xlane.xlu0 %1542
  %v1544 = vsel %vm1499, %v1522, 0.0
  %1545 = vadd.xlane.f32.xlu0 %v1544
  %v1546 = vpop.xlane.xlu0 %1545
  %v1547 = vmul.f32 %v1525, %v499
  %v1548 = vmul.f32 %v1528, %v601
  %v1549 = vmul.f32 %v1531, %v703
  %v1550 = vmul.f32 %v1534, %v805
  %v1551 = vmul.f32 %v1537, %v907
  %v1552 = vmul.f32 %v1540, %v1009
  %v1553 = vmul.f32 %v1543, %v1111
  %v1554 = vmul.f32 %v1546, %v1213
  %vm1555 = vcmask 523520
  %v1556 = vsel %vm1555, %v1547, 0.0
  %v1557 = vsel %vm1555, %v1548, 0.0
  %v1558 = vadd.f32 %v1556, %v1557
  %v1559 = vsel %vm1555, %v1549, 0.0
  %v1560 = vadd.f32 %v1558, %v1559
  %v1561 = vsel %vm1555, %v1550, 0.0
  %v1562 = vadd.f32 %v1560, %v1561
  %v1563 = vsel %vm1555, %v1551, 0.0
  %v1564 = vadd.f32 %v1562, %v1563
  %v1565 = vsel %vm1555, %v1552, 0.0
  %v1566 = vadd.f32 %v1564, %v1565
  %v1567 = vsel %vm1555, %v1553, 0.0
  %v1568 = vadd.f32 %v1566, %v1567
  %v1569 = vsel %vm1555, %v1554, 0.0
  %v1570 = vadd.f32 %v1568, %v1569
  %v1571 = vld [vmem:[#allocation2] sm:$0x1]
  %v1573 = vlaneseq
  %v1574 = vshrl.u32 %v1573, 7
  %v1575 = vsub.s32 0, %v1574
  %v1576 = vrot.slane %v1571, %v1575
  %1577 = vset.pattern.permute.xlu0 0
  %1578 = vperm.xlu0 %1577, %v1576
  %v1579 = vpop.permute.xlu0 %1578
  %v1581 = vadd.f32 %v1570, %v1579
  %1583 = vrot.lane.b32.xlu0 %v1581, 96
  %v1584 = vpop.permute.xlu0 %1583
  %1586 = vst.msk [vmem:[%s14] sm:$0xff] %vm238, %v1584
  // Predicated region
  $region50: #{encoder_t_forward.1} parent=0 // pred_check
    _
  $region51: #{encoder_t_forward.1} parent=0 // pred_check_branch
    %1588 = sbr.rel (0) target = $region53
  $region52: #{encoder_t_forward.1} parent=0 // pred_region
    _
  $region53: #{encoder_t_forward.1} parent=0 // pred_fallthru
    _
  // Predicated region
  $region54: #{encoder_t_forward.1} parent=0 // pred_check
    _
  $region55: #{encoder_t_forward.1} parent=0 // pred_check_branch
    %1590 = sbr.rel (0) target = $region57
  $region56: #{encoder_t_forward.1} parent=0 // pred_region
    _
  $region57: #{encoder_t_forward.1} parent=0 // pred_fallthru
    _
  // Predicated region
  $region58: #{encoder_t_forward.1} parent=0 // pred_check
    _
  $region59: #{encoder_t_forward.1} parent=0 // pred_check_branch
    %1592 = sbr.rel (0) target = $region61
  $region60: #{encoder_t_forward.1} parent=0 // pred_region
    _
  $region61: #{encoder_t_forward.1} parent=0 // pred_fallthru
    _
  // Predicated region
  $region62: #{encoder_t_forward.1} parent=0 // pred_check
    _
  $region63: #{encoder_t_forward.1} parent=0 // pred_check_branch
    %1594 = sbr.rel (0) target = $region65
  $region64: #{encoder_t_forward.1} parent=0 // pred_region
    _
  $region65: #{encoder_t_forward.1} parent=0 // pred_fallthru
    _
  // Predicated region
  $region66: #{encoder_t_forward.1} parent=0 // pred_check
    _
  $region67: #{encoder_t_forward.1} parent=0 // pred_check_branch
    %1596 = sbr.rel (0) target = $region69
  $region68: #{encoder_t_forward.1} parent=0 // pred_region
    _
  $region69: #{encoder_t_forward.1} parent=0 // pred_fallthru
    _
  // Predicated region
  $region70: #{encoder_t_forward.1} parent=0 // pred_check
    _
  $region71: #{encoder_t_forward.1} parent=0 // pred_check_branch
    %1598 = sbr.rel (0) target = $region73
  $region72: #{encoder_t_forward.1} parent=0 // pred_region
    _
  $region73: #{encoder_t_forward.1} parent=0 // pred_fallthru
    _
  // Predicated region
  $region74: #{encoder_t_forward.1} parent=0 // pred_check
    _
  $region75: #{encoder_t_forward.1} parent=0 // pred_check_branch
    %1600 = sbr.rel (0) target = $region77
  $region76: #{encoder_t_forward.1} parent=0 // pred_region
    _
  $region77: #{encoder_t_forward.1} parent=0 // pred_fallthru
    _
  // Predicated region
  $region78: #{encoder_t_forward.1} parent=0 // pred_check
    _
  $region79: #{encoder_t_forward.1} parent=0 // pred_check_branch
    %1602 = sbr.rel (0) target = $region81
  $region80: #{encoder_t_forward.1} parent=0 // pred_region
    _
  $region81: #{encoder_t_forward.1} parent=0 // pred_fallthru
    _

</llo_original>
